<compile_context>
chip_gen: v5e
topology: v5e:2x2
jax: 0.10.0
libtpu: 0.0.40
codegen_flags: <defaults>
</compile_context>

<pallas_src>
import functools
import math

import numpy as np
import jax
import jax.numpy as jnp
from jax.experimental import pallas as pl
from jax.experimental.pallas import tpu as pltpu


# -----------------------------------------------------------------------------
# shared in-kernel helpers
# -----------------------------------------------------------------------------
def _layer_norm(h, g, b):
    mu = jnp.mean(h, axis=-1, keepdims=True)
    var = jnp.mean(jnp.square(h - mu), axis=-1, keepdims=True)
    return (h - mu) * jax.lax.rsqrt(var + 1e-5) * g + b


def _predictor_core(xp, w1_ref, w2_ref, vec_ref, hpad_ref, mask_row):
    """One VariancePredictor on a single (padded) sequence.

    xp       : (L+2, H) f32, conv-padded input (halo rows are zero)
    w1_ref   : (K*H, F) bf16   fused conv1 weight
    w2_ref   : (K*F, F) bf16   fused conv2 weight
    vec_ref  : (8, F)  f32     rows: b1,g1,be1,b2,g2,be2,wll,[bll,0,...]
    hpad_ref : (L+2, F) f32    scratch; halo rows pre-zeroed by the caller
    mask_row : (1, L)  bool    True where padding
    returns  : (1, L)  f32     masked prediction (lane-dense)
    """
    K = 3
    L = mask_row.shape[1]

    # conv1d_1 (pad=(K-1)//2): single fused MXU contraction over (L, K*H) slab
    slab1 = jnp.concatenate([xp[k:k + L, :] for k in range(K)], axis=-1)
    h = jnp.dot(slab1.astype(jnp.bfloat16), w1_ref[...],
                preferred_element_type=jnp.float32)
    h = jnp.maximum(h + vec_ref[0:1, :], 0.0)                    # ReLU (f32)
    h = _layer_norm(h, vec_ref[1:2, :], vec_ref[2:3, :])         # LN 1 (f32)
    # dropout_1: identity (eval)

    # conv1d_2 (pad=1 hard-coded in the PyTorch module): stage h in the padded
    # scratch (only the body rows are rewritten; halo rows stay zero), read the
    # three shifted windows and fuse into one contraction.
    hpad_ref[pl.ds(1, L), :] = h
    slab2 = jnp.concatenate([hpad_ref[pl.ds(k, L), :] for k in range(K)],
                            axis=-1)
    h2 = jnp.dot(slab2.astype(jnp.bfloat16), w2_ref[...],
                 preferred_element_type=jnp.float32)
    h2 = jnp.maximum(h2 + vec_ref[3:4, :], 0.0)                  # ReLU
    h2 = _layer_norm(h2, vec_ref[4:5, :], vec_ref[5:6, :])       # LN 2
    # dropout_2: identity (eval)

    # Linear(F -> 1), produced directly as a lane-dense (1, L) row
    # (contract F of the weight row against F of h2 -> no (L,1) column store).
    pred = jax.lax.dot_general(vec_ref[6:7, :], h2,
                               (((1,), (1,)), ((), ())),
                               preferred_element_type=jnp.float32)   # (1, L)
    pred = pred + vec_ref[7:8, 0:1]
    return jnp.where(mask_row, 0.0, pred)


def _bucket_embed(pred_row, bins_ref, tab_ref):
    """torch.bucketize(pred, bins) + embedding lookup, all in row layout.

    pred_row : (1, L) f32
    bins_ref : (NB-1, 1) f32
    tab_ref  : (NB, H) f32
    returns  : (L, H) f32 embedding
    """
    nb = tab_ref.shape[0]
    L = pred_row.shape[1]
    # bucketize (right=False): number of boundaries strictly less than v
    cmp = (bins_ref[...] < pred_row).astype(jnp.float32)             # (NB-1, L)
    idx_row = jnp.sum(cmp, axis=0, keepdims=True).astype(jnp.int32)  # (1, L)
    onehot_t = (jax.lax.broadcasted_iota(jnp.int32, (nb, L), 0)
                == idx_row).astype(jnp.bfloat16)                     # (NB, L)
    # emb = onehot @ table, expressed with the one-hot transposed so everything
    # stays lane-dense; contraction over NB.
    return jax.lax.dot_general(onehot_t, tab_ref[...].astype(jnp.bfloat16),
                               (((0,), (0,)), ((), ())),
                               preferred_element_type=jnp.float32)   # (L, H)


# -----------------------------------------------------------------------------
# Kernel A: duration predictor + pitch predictor + pitch embedding residual add
# -----------------------------------------------------------------------------
def _d_p_pitch_kernel(len_ref,                      # SMEM (B,) int32
                      xpad_ref,                     # (1, L+2, H)
                      dw1_ref, dw2_ref, dvec_ref,   # duration predictor params
                      pw1_ref, pw2_ref, pvec_ref,   # pitch predictor params
                      pbins_ref, ptab_ref,          # pitch bins / embedding
                      logd_ref, ppred_ref, xout_ref,   # outputs
                      hpad_ref,                     # scratch (L+2, F) f32
                      *, p_control):
    L = logd_ref.shape[2]
    H = xpad_ref.shape[2]
    F = hpad_ref.shape[1]

    src_len = len_ref[pl.program_id(0)]
    mask_row = jax.lax.broadcasted_iota(jnp.int32, (1, L), 1) >= src_len

    # zero only the two halo rows of the conv2 staging buffer (no full memset)
    hpad_ref[pl.ds(0, 1), :] = jnp.zeros((1, F), jnp.float32)
    hpad_ref[pl.ds(hpad_ref.shape[0] - 1, 1), :] = jnp.zeros((1, F), jnp.float32)

    xp = xpad_ref[0].astype(jnp.float32)                          # (L+2, H)

    # log-duration prediction
    log_d = _predictor_core(xp, dw1_ref, dw2_ref, dvec_ref, hpad_ref, mask_row)
    logd_ref[0] = log_d

    # pitch prediction (scaled by p_control, as in the reference)
    p_pred = _predictor_core(xp, pw1_ref, pw2_ref, pvec_ref, hpad_ref,
                             mask_row) * p_control
    ppred_ref[0] = p_pred

    # pitch embedding + residual add; re-emit in conv-padded layout so the
    # energy kernel consumes it directly (no re-pad / extra HBM round trip).
    emb = _bucket_embed(p_pred, pbins_ref, ptab_ref)              # (L, H)
    x_new = xp[1:1 + L, :] + emb
    xout_ref[0, pl.ds(0, 1), :] = jnp.zeros((1, H), xout_ref.dtype)
    xout_ref[0, pl.ds(L + 1, 1), :] = jnp.zeros((1, H), xout_ref.dtype)
    xout_ref[0, pl.ds(1, L), :] = x_new.astype(xout_ref.dtype)


# -----------------------------------------------------------------------------
# Kernel B: energy predictor + energy embedding residual add
# -----------------------------------------------------------------------------
def _e_energy_kernel(len_ref,                       # SMEM (B,) int32
                     xpad_ref,                      # (1, L+2, H) (pitch-added)
                     ew1_ref, ew2_ref, evec_ref,    # energy predictor params
                     ebins_ref, etab_ref,           # energy bins / embedding
                     epred_ref, xout_ref,           # outputs
                     hpad_ref,                      # scratch (L+2, F) f32
                     *, e_scale):
    L = epred_ref.shape[2]
    F = hpad_ref.shape[1]

    src_len = len_ref[pl.program_id(0)]
    mask_row = jax.lax.broadcasted_iota(jnp.int32, (1, L), 1) >= src_len

    hpad_ref[pl.ds(0, 1), :] = jnp.zeros((1, F), jnp.float32)
    hpad_ref[pl.ds(hpad_ref.shape[0] - 1, 1), :] = jnp.zeros((1, F), jnp.float32)

    xp = xpad_ref[0].astype(jnp.float32)                          # (L+2, H)

    e_pred = _predictor_core(xp, ew1_ref, ew2_ref, evec_ref, hpad_ref,
                             mask_row) * e_scale
    epred_ref[0] = e_pred

    emb = _bucket_embed(e_pred, ebins_ref, etab_ref)              # (L, H)
    xout_ref[0] = (xp[1:1 + L, :] + emb).astype(xout_ref.dtype)


# -----------------------------------------------------------------------------
# Parameter packing for the fused kernels
# -----------------------------------------------------------------------------
def _pack_predictor(p):
    K, H, F = p["w1"].shape
    w1 = p["w1"].reshape(K * H, F).astype(jnp.bfloat16)       # fused conv1
    w2 = p["w2"].reshape(K * F, F).astype(jnp.bfloat16)       # fused conv2
    bll_row = jnp.concatenate(
        [p["bll"], jnp.zeros((1, F - 1), jnp.float32)], axis=1)
    vec = jnp.concatenate(
        [p["b1"], p["g1"], p["be1"], p["b2"], p["g2"], p["be2"],
         p["wll"].reshape(1, F), bll_row], axis=0)             # (8, F) f32
    return w1, w2, vec


# -----------------------------------------------------------------------------
# LengthRegulator (plain JAX glue; data-dependent expansion with static max_len)
# -----------------------------------------------------------------------------
# TODO(synk): PyTorch returns a dynamically-sized mel axis when max_len is None;
#             JAX needs a static max_len, so output is padded/truncated to it.
def length_regulate(x, durations, max_len):
    B, L, H = x.shape
    cum = jnp.cumsum(durations, axis=1)                       # (B, L)
    mel_len = cum[:, -1]                                      # (B,)
    frames = jnp.arange(max_len, dtype=jnp.int32)             # (M,)
    # frame t belongs to the first phoneme i with cum[i] > t  (searchsorted,
    # O(M log L), instead of an O(M*L) comparison tensor).
    idx = jax.vmap(lambda c: jnp.searchsorted(c, frames, side="right"))(cum)
    idx = jnp.minimum(idx, L - 1)
    expanded = jnp.take_along_axis(x, idx[:, :, None], axis=1)    # (B, M, H)
    valid = frames[None, :] < jnp.minimum(mel_len, max_len)[:, None]
    expanded = expanded * valid[:, :, None].astype(x.dtype)
    mel_mask = jnp.logical_not(valid)                         # True = padding
    return expanded, mel_len, mel_mask


# -----------------------------------------------------------------------------
# VarianceAdaptor forward (phoneme-level pitch/energy, targets=None)
# -----------------------------------------------------------------------------
def variance_adaptor(params, x, src_lens, max_len,
                     p_control=1.0, e_control=1.0, d_control=1.0):
    B, L, H = x.shape
    K, _, F = params["d_pred"]["w1"].shape
    assert K == 3, "module hard-codes padding=1 for conv1d_2; K must be 3"
    NB = params["p_emb"].shape[0]
    pad = (K - 1) // 2
    Lp = L + 2 * pad

    x_pad = jnp.pad(x.astype(jnp.float32), ((0, 0), (pad, pad), (0, 0)))
    lens_i32 = src_lens.astype(jnp.int32)

    dw1, dw2, dvec = _pack_predictor(params["d_pred"])
    pw1, pw2, pvec = _pack_predictor(params["p_pred"])
    ew1, ew2, evec = _pack_predictor(params["e_pred"])
    p_bins_col = params["p_bins"].reshape(NB - 1, 1)
    e_bins_col = params["e_bins"].reshape(NB - 1, 1)

    # ---- Kernel A: d_pred + p_pred + pitch embedding add ----
    kern_a = functools.partial(_d_p_pitch_kernel, p_control=float(p_control))
    logd3, ppred3, x_pitch_pad = pl.pallas_call(
        kern_a,
        out_shape=(jax.ShapeDtypeStruct((B, 1, L), jnp.float32),
                   jax.ShapeDtypeStruct((B, 1, L), jnp.float32),
                   jax.ShapeDtypeStruct((B, Lp, H), jnp.float32)),
        grid_spec=pltpu.PrefetchScalarGridSpec(
            num_scalar_prefetch=1,
            grid=(B,),
            in_specs=[
                pl.BlockSpec((1, Lp, H), lambda b, lens: (b, 0, 0)),
                pl.BlockSpec((K * H, F), lambda b, lens: (0, 0)),
                pl.BlockSpec((K * F, F), lambda b, lens: (0, 0)),
                pl.BlockSpec((8, F), lambda b, lens: (0, 0)),
                pl.BlockSpec((K * H, F), lambda b, lens: (0, 0)),
                pl.BlockSpec((K * F, F), lambda b, lens: (0, 0)),
                pl.BlockSpec((8, F), lambda b, lens: (0, 0)),
                pl.BlockSpec((NB - 1, 1), lambda b, lens: (0, 0)),
                pl.BlockSpec((NB, H), lambda b, lens: (0, 0)),
            ],
            out_specs=(
                pl.BlockSpec((1, 1, L), lambda b, lens: (b, 0, 0)),
                pl.BlockSpec((1, 1, L), lambda b, lens: (b, 0, 0)),
                pl.BlockSpec((1, Lp, H), lambda b, lens: (b, 0, 0)),
            ),
            scratch_shapes=[pltpu.VMEM((Lp, F), jnp.float32)],
        ),
        compiler_params=pltpu.CompilerParams(
            dimension_semantics=("parallel",)),
    )(lens_i32, x_pad, dw1, dw2, dvec, pw1, pw2, pvec, p_bins_col,
      params["p_emb"])

    # ---- Kernel B: e_pred + energy embedding add ----
    # NOTE: the reference passes p_control (not e_control) to the energy branch;
    # we reproduce that faithfully.  `e_control` is accepted but unused.
    kern_b = functools.partial(_e_energy_kernel, e_scale=float(p_control))
    epred3, x_out = pl.pallas_call(
        kern_b,
        out_shape=(jax.ShapeDtypeStruct((B, 1, L), jnp.float32),
                   jax.ShapeDtypeStruct((B, L, H), jnp.float32)),
        grid_spec=pltpu.PrefetchScalarGridSpec(
            num_scalar_prefetch=1,
            grid=(B,),
            in_specs=[
                pl.BlockSpec((1, Lp, H), lambda b, lens: (b, 0, 0)),
                pl.BlockSpec((K * H, F), lambda b, lens: (0, 0)),
                pl.BlockSpec((K * F, F), lambda b, lens: (0, 0)),
                pl.BlockSpec((8, F), lambda b, lens: (0, 0)),
                pl.BlockSpec((NB - 1, 1), lambda b, lens: (0, 0)),
                pl.BlockSpec((NB, H), lambda b, lens: (0, 0)),
            ],
            out_specs=(
                pl.BlockSpec((1, 1, L), lambda b, lens: (b, 0, 0)),
                pl.BlockSpec((1, L, H), lambda b, lens: (b, 0, 0)),
            ),
            scratch_shapes=[pltpu.VMEM((Lp, F), jnp.float32)],
        ),
        compiler_params=pltpu.CompilerParams(
            dimension_semantics=("parallel",)),
    )(lens_i32, x_pitch_pad, ew1, ew2, evec, e_bins_col, params["e_emb"])

    log_d_pred = logd3[:, 0, :]
    p_pred = ppred3[:, 0, :]
    e_pred = epred3[:, 0, :]

    # duration rounding + length regulation
    d_rounded = jnp.maximum(
        jnp.round(jnp.exp(log_d_pred) - 1.0) * d_control, 0.0)
    dur_int = jnp.floor(d_rounded).astype(jnp.int32)
    x_reg, mel_len, mel_mask = length_regulate(x_out, dur_int, max_len)

    return x_reg, p_pred, e_pred, log_d_pred, d_rounded, mel_len, mel_mask


# -----------------------------------------------------------------------------
# Pure-JAX reference for the VariancePredictor (bf16 matmuls, like the kernel)
# -----------------------------------------------------------------------------
def _predictor_ref(x, mask, p):
    def ln(h, g, b):
        mu = jnp.mean(h, -1, keepdims=True)
        var = jnp.mean((h - mu) ** 2, -1, keepdims=True)
        return (h - mu) / jnp.sqrt(var + 1e-5) * g + b

    K, H, F = p["w1"].shape
    L = x.shape[1]
    pad = (K - 1) // 2
    xp = jnp.pad(x, ((0, 0), (pad, pad), (0, 0)))
    h = sum(jnp.einsum("blh,hf->blf", xp[:, k:k + L].astype(jnp.bfloat16),
                       p["w1"][k].astype(jnp.bfloat16),
                       preferred_element_type=jnp.float32)
            for k in range(K)) + p["b1"]
    h = ln(jnp.maximum(h, 0.0), p["g1"], p["be1"])
    hp = jnp.pad(h, ((0, 0), (1, 1), (0, 0)))
    h2 = sum(jnp.einsum("blf,fg->blg", hp[:, k:k + L].astype(jnp.bfloat16),
                        p["w2"][k].astype(jnp.bfloat16),
                        preferred_element_type=jnp.float32)
             for k in range(K)) + p["b2"]
    h2 = ln(jnp.maximum(h2, 0.0), p["g2"], p["be2"])
    out = jnp.einsum("blf,fo->blo", h2, p["wll"])[..., 0] + p["bll"][0, 0]
    return jnp.where(mask, 0.0, out)


# -----------------------------------------------------------------------------
# Deterministic parameter construction
# -----------------------------------------------------------------------------
def init_predictor(key, H, F, K):
    ks = jax.random.split(key, 3)
    s1 = 1.0 / math.sqrt(H * K)
    s2 = 1.0 / math.sqrt(F * K)
    sl = 1.0 / math.sqrt(F)
    return {
        "w1": s1 * jax.random.normal(ks[0], (K, H, F), jnp.float32),
        "b1": jnp.zeros((1, F), jnp.float32),
        "g1": jnp.ones((1, F), jnp.float32),
        "be1": jnp.zeros((1, F), jnp.float32),
        "w2": s2 * jax.random.normal(ks[1], (K, F, F), jnp.float32),
        "b2": jnp.zeros((1, F), jnp.float32),
        "g2": jnp.ones((1, F), jnp.float32),
        "be2": jnp.zeros((1, F), jnp.float32),
        "wll": sl * jax.random.normal(ks[2], (F, 1), jnp.float32),
        "bll": 0.01 * jnp.ones((1, 1), jnp.float32),
    }


if __name__ == "__main__":
    B, L, H = 2, 16, 32          # batch, phoneme seq len, encoder_hidden
    F, K = 32, 3                 # variance_predictor filter_size / kernel_size
    N_BINS = 16                  # variance_embedding n_bins
    MAX_MEL = 48                 # static max mel length

    key = jax.random.PRNGKey(0)
    k_x, k_d, k_p, k_e, k_pe, k_ee = jax.random.split(key, 6)

    x = jax.random.normal(k_x, (B, L, H), jnp.float32)
    src_lens = jnp.array([16, 12], jnp.int32)
    src_mask = jnp.arange(L)[None, :] >= src_lens[:, None]   # True = padding

    params = {
        "d_pred": init_predictor(k_d, H, F, K),
        "p_pred": init_predictor(k_p, H, F, K),
        "e_pred": init_predictor(k_e, H, F, K),
        # linear quantization bins (stand-in for stats.json min/max)
        "p_bins": jnp.linspace(-2.0, 2.0, N_BINS - 1).reshape(1, -1),
        "e_bins": jnp.linspace(-2.0, 2.0, N_BINS - 1).reshape(1, -1),
        "p_emb": 0.1 * jax.random.normal(k_pe, (N_BINS, H), jnp.float32),
        "e_emb": 0.1 * jax.random.normal(k_ee, (N_BINS, H), jnp.float32),
    }

    outs = variance_adaptor(params, x, src_lens, max_len=MAX_MEL)
    outs = jax.block_until_ready(outs)
    (x_out, p_pred, e_pred, log_d_pred, d_rounded, mel_len, mel_mask) = outs

    # validate the fused Pallas predictors against a pure-JAX reference
    ref_log_d = _predictor_ref(x, src_mask, params["d_pred"])
    ref_p = _predictor_ref(x, src_mask, params["p_pred"])
    np.testing.assert_allclose(np.asarray(log_d_pred), np.asarray(ref_log_d),
                               rtol=2e-2, atol=2e-2)
    np.testing.assert_allclose(np.asarray(p_pred), np.asarray(ref_p),
                               rtol=2e-2, atol=2e-2)
    assert x_out.shape == (B, MAX_MEL, H)
    assert p_pred.shape == (B, L) and e_pred.shape == (B, L)
    assert log_d_pred.shape == (B, L) and d_rounded.shape == (B, L)
    assert mel_mask.shape == (B, MAX_MEL) and mel_len.shape == (B,)

    print("KERNEL_OK")
</pallas_src>

<mosaic_0001>
module attributes {stable_mosaic.version = 11 : i64} {
  func.func @_d_p_pitch_kernel(%arg0: i32, %arg1: memref<2xi32, #tpu.memory_space<smem>>, %arg2: memref<1x18x32xf32, #tpu.memory_space<vmem>>, %arg3: memref<96x32xbf16, #tpu.memory_space<vmem>>, %arg4: memref<96x32xbf16, #tpu.memory_space<vmem>>, %arg5: memref<8x32xf32, #tpu.memory_space<vmem>>, %arg6: memref<96x32xbf16, #tpu.memory_space<vmem>>, %arg7: memref<96x32xbf16, #tpu.memory_space<vmem>>, %arg8: memref<8x32xf32, #tpu.memory_space<vmem>>, %arg9: memref<15x1xf32, #tpu.memory_space<vmem>>, %arg10: memref<16x32xf32, #tpu.memory_space<vmem>>, %arg11: memref<1x1x16xf32, #tpu.memory_space<vmem>>, %arg12: memref<1x1x16xf32, #tpu.memory_space<vmem>>, %arg13: memref<1x18x32xf32, #tpu.memory_space<vmem>>, %arg14: memref<18x32xf32, #tpu.memory_space<vmem>>) attributes {dimension_semantics = [#tpu.dimension_semantics<parallel>], iteration_bounds = array<i64: 2>, scalar_prefetch = 1 : i64, scratch_operands = 1 : i64, tpu.core_type = #tpu.core_type<tc>, window_params = [{transform_indices = @transform_0, window_bounds = array<i64: 1, 18, 32>}, {pipeline_mode = #tpu.pipeline_mode<synchronous>, transform_indices = @transform_1, window_bounds = array<i64: 96, 32>}, {pipeline_mode = #tpu.pipeline_mode<synchronous>, transform_indices = @transform_2, window_bounds = array<i64: 96, 32>}, {pipeline_mode = #tpu.pipeline_mode<synchronous>, transform_indices = @transform_3, window_bounds = array<i64: 8, 32>}, {pipeline_mode = #tpu.pipeline_mode<synchronous>, transform_indices = @transform_4, window_bounds = array<i64: 96, 32>}, {pipeline_mode = #tpu.pipeline_mode<synchronous>, transform_indices = @transform_5, window_bounds = array<i64: 96, 32>}, {pipeline_mode = #tpu.pipeline_mode<synchronous>, transform_indices = @transform_6, window_bounds = array<i64: 8, 32>}, {pipeline_mode = #tpu.pipeline_mode<synchronous>, transform_indices = @transform_7, window_bounds = array<i64: 15, 1>}, {pipeline_mode = #tpu.pipeline_mode<synchronous>, transform_indices = @transform_8, window_bounds = array<i64: 16, 32>}, {transform_indices = @transform_9, window_bounds = array<i64: 1, 1, 16>}, {transform_indices = @transform_10, window_bounds = array<i64: 1, 1, 16>}, {transform_indices = @transform_11, window_bounds = array<i64: 1, 18, 32>}]} {
    %0 = arith.index_cast %arg0 : i32 to index
    %1 = memref.load %arg1[%0] : memref<2xi32, #tpu.memory_space<smem>>
    %2 = tpu.iota {dimensions = array<i32: 1>} : vector<1x16xi32>
    %3 = vector.broadcast %1 : i32 to vector<1x16xi32>
    %4 = arith.cmpi sge, %2, %3 : vector<1x16xi32>
    %cst = arith.constant 0.000000e+00 : f32
    %5 = vector.broadcast %cst : f32 to vector<1x32xf32>
    %c0 = arith.constant 0 : index
    %c0_0 = arith.constant 0 : index
    %6 = vector.load %arg14[%c0, %c0_0] : memref<18x32xf32, #tpu.memory_space<vmem>>, vector<1x32xf32>
    tpu.vector_store %arg14[%c0, %c0_0], %5 {strides = array<i32>} : memref<18x32xf32, #tpu.memory_space<vmem>>, vector<1x32xf32>,
    %cst_1 = arith.constant 0.000000e+00 : f32
    %7 = vector.broadcast %cst_1 : f32 to vector<1x32xf32>
    %c17 = arith.constant 17 : index
    %c0_2 = arith.constant 0 : index
    %8 = vector.load %arg14[%c17, %c0_2] : memref<18x32xf32, #tpu.memory_space<vmem>>, vector<1x32xf32>
    tpu.vector_store %arg14[%c17, %c0_2], %7 {strides = array<i32>} : memref<18x32xf32, #tpu.memory_space<vmem>>, vector<1x32xf32>,
    %c0_3 = arith.constant 0 : index
    %c0_4 = arith.constant 0 : index
    %c0_5 = arith.constant 0 : index
    %9 = vector.load %arg2[%c0_3, %c0_4, %c0_5] : memref<1x18x32xf32, #tpu.memory_space<vmem>>, vector<1x18x32xf32>
    %10 = vector.shape_cast %9 : vector<1x18x32xf32> to vector<18x32xf32>
    %11 = vector.extract_strided_slice %10 {offsets = [0, 0], sizes = [16, 32], strides = [1, 1]} : vector<18x32xf32> to vector<16x32xf32>
    %12 = vector.extract_strided_slice %10 {offsets = [1, 0], sizes = [16, 32], strides = [1, 1]} : vector<18x32xf32> to vector<16x32xf32>
    %13 = vector.extract_strided_slice %10 {offsets = [2, 0], sizes = [16, 32], strides = [1, 1]} : vector<18x32xf32> to vector<16x32xf32>
    %14 = tpu.concatenate %11, %12, %13 in 1 : vector<16x32xf32>, vector<16x32xf32>, vector<16x32xf32> -> vector<16x96xf32>
    %15 = arith.truncf %14 : vector<16x96xf32> to vector<16x96xbf16>
    %c0_6 = arith.constant 0 : index
    %c0_7 = arith.constant 0 : index
    %16 = vector.load %arg3[%c0_6, %c0_7] : memref<96x32xbf16, #tpu.memory_space<vmem>>, vector<96x32xbf16>
    %cst_8 = arith.constant dense<0.000000e+00> : vector<16x32xf32>
    %17 = tpu.matmul %15, %16, %cst_8 {dimension_numbers = #tpu.dot_dimension_numbers<[1], [0], [0], [1], [0, 0, 1, 1], [], []>} : vector<16x96xbf16>, vector<96x32xbf16>, vector<16x32xf32> -> vector<16x32xf32>
    %c0_9 = arith.constant 0 : index
    %c0_10 = arith.constant 0 : index
    %18 = vector.load %arg5[%c0_9, %c0_10] : memref<8x32xf32, #tpu.memory_space<vmem>>, vector<1x32xf32>
    %19 = vector.broadcast %18 : vector<1x32xf32> to vector<16x32xf32>
    %20 = arith.addf %17, %19 : vector<16x32xf32>
    %cst_11 = arith.constant 0.000000e+00 : f32
    %21 = vector.broadcast %cst_11 : f32 to vector<16x32xf32>
    %22 = arith.maximumf %20, %21 : vector<16x32xf32>
    %c1 = arith.constant 1 : index
    %c0_12 = arith.constant 0 : index
    %23 = vector.load %arg5[%c1, %c0_12] : memref<8x32xf32, #tpu.memory_space<vmem>>, vector<1x32xf32>
    %c2 = arith.constant 2 : index
    %c0_13 = arith.constant 0 : index
    %24 = vector.load %arg5[%c2, %c0_13] : memref<8x32xf32, #tpu.memory_space<vmem>>, vector<1x32xf32>
    %cst_14 = arith.constant dense<0.000000e+00> : vector<16xf32>
    %25 = vector.multi_reduction <add>, %22, %cst_14 [1] : vector<16x32xf32> to vector<16xf32>
    %26 = vector.shape_cast %25 : vector<16xf32> to vector<16x1xf32>
    %cst_15 = arith.constant 3.200000e+01 : f32
    %27 = vector.broadcast %cst_15 : f32 to vector<16x1xf32>
    %28 = arith.divf %26, %27 : vector<16x1xf32>
    %29 = vector.broadcast %28 : vector<16x1xf32> to vector<16x32xf32>
    %30 = arith.subf %22, %29 : vector<16x32xf32>
    %31 = arith.mulf %30, %30 : vector<16x32xf32>
    %cst_16 = arith.constant dense<0.000000e+00> : vector<16xf32>
    %32 = vector.multi_reduction <add>, %31, %cst_16 [1] : vector<16x32xf32> to vector<16xf32>
    %33 = vector.shape_cast %32 : vector<16xf32> to vector<16x1xf32>
    %cst_17 = arith.constant 3.200000e+01 : f32
    %34 = vector.broadcast %cst_17 : f32 to vector<16x1xf32>
    %35 = arith.divf %33, %34 : vector<16x1xf32>
    %36 = vector.broadcast %28 : vector<16x1xf32> to vector<16x32xf32>
    %37 = arith.subf %22, %36 : vector<16x32xf32>
    %cst_18 = arith.constant 9.99999974E-6 : f32
    %38 = vector.broadcast %cst_18 : f32 to vector<16x1xf32>
    %39 = arith.addf %35, %38 : vector<16x1xf32>
    %40 = math.rsqrt %39 : vector<16x1xf32>
    %41 = vector.broadcast %40 : vector<16x1xf32> to vector<16x32xf32>
    %42 = arith.mulf %37, %41 : vector<16x32xf32>
    %43 = vector.broadcast %23 : vector<1x32xf32> to vector<16x32xf32>
    %44 = arith.mulf %42, %43 : vector<16x32xf32>
    %45 = vector.broadcast %24 : vector<1x32xf32> to vector<16x32xf32>
    %46 = arith.addf %44, %45 : vector<16x32xf32>
    %c1_19 = arith.constant 1 : index
    %c0_20 = arith.constant 0 : index
    %47 = vector.load %arg14[%c1_19, %c0_20] : memref<18x32xf32, #tpu.memory_space<vmem>>, vector<16x32xf32>
    tpu.vector_store %arg14[%c1_19, %c0_20], %46 {strides = array<i32>} : memref<18x32xf32, #tpu.memory_space<vmem>>, vector<16x32xf32>,
    %c0_21 = arith.constant 0 : index
    %c0_22 = arith.constant 0 : index
    %48 = vector.load %arg14[%c0_21, %c0_22] : memref<18x32xf32, #tpu.memory_space<vmem>>, vector<16x32xf32>
    %c1_23 = arith.constant 1 : index
    %c0_24 = arith.constant 0 : index
    %49 = vector.load %arg14[%c1_23, %c0_24] : memref<18x32xf32, #tpu.memory_space<vmem>>, vector<16x32xf32>
    %c2_25 = arith.constant 2 : index
    %c0_26 = arith.constant 0 : index
    %50 = vector.load %arg14[%c2_25, %c0_26] : memref<18x32xf32, #tpu.memory_space<vmem>>, vector<16x32xf32>
    %51 = tpu.concatenate %48, %49, %50 in 1 : vector<16x32xf32>, vector<16x32xf32>, vector<16x32xf32> -> vector<16x96xf32>
    %52 = arith.truncf %51 : vector<16x96xf32> to vector<16x96xbf16>
    %c0_27 = arith.constant 0 : index
    %c0_28 = arith.constant 0 : index
    %53 = vector.load %arg4[%c0_27, %c0_28] : memref<96x32xbf16, #tpu.memory_space<vmem>>, vector<96x32xbf16>
    %cst_29 = arith.constant dense<0.000000e+00> : vector<16x32xf32>
    %54 = tpu.matmul %52, %53, %cst_29 {dimension_numbers = #tpu.dot_dimension_numbers<[1], [0], [0], [1], [0, 0, 1, 1], [], []>} : vector<16x96xbf16>, vector<96x32xbf16>, vector<16x32xf32> -> vector<16x32xf32>
    %c3 = arith.constant 3 : index
    %c0_30 = arith.constant 0 : index
    %55 = vector.load %arg5[%c3, %c0_30] : memref<8x32xf32, #tpu.memory_space<vmem>>, vector<1x32xf32>
    %56 = vector.broadcast %55 : vector<1x32xf32> to vector<16x32xf32>
    %57 = arith.addf %54, %56 : vector<16x32xf32>
    %cst_31 = arith.constant 0.000000e+00 : f32
    %58 = vector.broadcast %cst_31 : f32 to vector<16x32xf32>
    %59 = arith.maximumf %57, %58 : vector<16x32xf32>
    %c4 = arith.constant 4 : index
    %c0_32 = arith.constant 0 : index
    %60 = vector.load %arg5[%c4, %c0_32] : memref<8x32xf32, #tpu.memory_space<vmem>>, vector<1x32xf32>
    %c5 = arith.constant 5 : index
    %c0_33 = arith.constant 0 : index
    %61 = vector.load %arg5[%c5, %c0_33] : memref<8x32xf32, #tpu.memory_space<vmem>>, vector<1x32xf32>
    %cst_34 = arith.constant dense<0.000000e+00> : vector<16xf32>
    %62 = vector.multi_reduction <add>, %59, %cst_34 [1] : vector<16x32xf32> to vector<16xf32>
    %63 = vector.shape_cast %62 : vector<16xf32> to vector<16x1xf32>
    %cst_35 = arith.constant 3.200000e+01 : f32
    %64 = vector.broadcast %cst_35 : f32 to vector<16x1xf32>
    %65 = arith.divf %63, %64 : vector<16x1xf32>
    %66 = vector.broadcast %65 : vector<16x1xf32> to vector<16x32xf32>
    %67 = arith.subf %59, %66 : vector<16x32xf32>
    %68 = arith.mulf %67, %67 : vector<16x32xf32>
    %cst_36 = arith.constant dense<0.000000e+00> : vector<16xf32>
    %69 = vector.multi_reduction <add>, %68, %cst_36 [1] : vector<16x32xf32> to vector<16xf32>
    %70 = vector.shape_cast %69 : vector<16xf32> to vector<16x1xf32>
    %cst_37 = arith.constant 3.200000e+01 : f32
    %71 = vector.broadcast %cst_37 : f32 to vector<16x1xf32>
    %72 = arith.divf %70, %71 : vector<16x1xf32>
    %73 = vector.broadcast %65 : vector<16x1xf32> to vector<16x32xf32>
    %74 = arith.subf %59, %73 : vector<16x32xf32>
    %cst_38 = arith.constant 9.99999974E-6 : f32
    %75 = vector.broadcast %cst_38 : f32 to vector<16x1xf32>
    %76 = arith.addf %72, %75 : vector<16x1xf32>
    %77 = math.rsqrt %76 : vector<16x1xf32>
    %78 = vector.broadcast %77 : vector<16x1xf32> to vector<16x32xf32>
    %79 = arith.mulf %74, %78 : vector<16x32xf32>
    %80 = vector.broadcast %60 : vector<1x32xf32> to vector<16x32xf32>
    %81 = arith.mulf %79, %80 : vector<16x32xf32>
    %82 = vector.broadcast %61 : vector<1x32xf32> to vector<16x32xf32>
    %83 = arith.addf %81, %82 : vector<16x32xf32>
    %c6 = arith.constant 6 : index
    %c0_39 = arith.constant 0 : index
    %84 = vector.load %arg5[%c6, %c0_39] : memref<8x32xf32, #tpu.memory_space<vmem>>, vector<1x32xf32>
    %cst_40 = arith.constant dense<0.000000e+00> : vector<1x16xf32>
    %85 = tpu.matmul %84, %83, %cst_40 {dimension_numbers = #tpu.dot_dimension_numbers<[1], [1], [0], [0], [0, 0, 1, 0], [], []>} : vector<1x32xf32>, vector<16x32xf32>, vector<1x16xf32> -> vector<1x16xf32>
    %c7 = arith.constant 7 : index
    %c0_41 = arith.constant 0 : index
    %86 = vector.load %arg5[%c7, %c0_41] : memref<8x32xf32, #tpu.memory_space<vmem>>, vector<1x1xf32>
    %87 = vector.broadcast %86 : vector<1x1xf32> to vector<1x16xf32>
    %88 = arith.addf %85, %87 : vector<1x16xf32>
    %cst_42 = arith.constant 0.000000e+00 : f32
    %89 = vector.broadcast %cst_42 : f32 to vector<1x16xf32>
    %90 = arith.select %4, %89, %88 : vector<1x16xi1>, vector<1x16xf32>
    %c0_43 = arith.constant 0 : index
    %c0_44 = arith.constant 0 : index
    %c0_45 = arith.constant 0 : index
    %91 = vector.load %arg11[%c0_43, %c0_44, %c0_45] : memref<1x1x16xf32, #tpu.memory_space<vmem>>, vector<1x1x16xf32>
    %92 = vector.shape_cast %91 : vector<1x1x16xf32> to vector<1x16xf32>
    %93 = vector.shape_cast %90 : vector<1x16xf32> to vector<1x1x16xf32>
    tpu.vector_store %arg11[%c0_43, %c0_44, %c0_45], %93 {strides = array<i32>} : memref<1x1x16xf32, #tpu.memory_space<vmem>>, vector<1x1x16xf32>,
    %94 = vector.extract_strided_slice %10 {offsets = [0, 0], sizes = [16, 32], strides = [1, 1]} : vector<18x32xf32> to vector<16x32xf32>
    %95 = vector.extract_strided_slice %10 {offsets = [1, 0], sizes = [16, 32], strides = [1, 1]} : vector<18x32xf32> to vector<16x32xf32>
    %96 = vector.extract_strided_slice %10 {offsets = [2, 0], sizes = [16, 32], strides = [1, 1]} : vector<18x32xf32> to vector<16x32xf32>
    %97 = tpu.concatenate %94, %95, %96 in 1 : vector<16x32xf32>, vector<16x32xf32>, vector<16x32xf32> -> vector<16x96xf32>
    %98 = arith.truncf %97 : vector<16x96xf32> to vector<16x96xbf16>
    %c0_46 = arith.constant 0 : index
    %c0_47 = arith.constant 0 : index
    %99 = vector.load %arg6[%c0_46, %c0_47] : memref<96x32xbf16, #tpu.memory_space<vmem>>, vector<96x32xbf16>
    %cst_48 = arith.constant dense<0.000000e+00> : vector<16x32xf32>
    %100 = tpu.matmul %98, %99, %cst_48 {dimension_numbers = #tpu.dot_dimension_numbers<[1], [0], [0], [1], [0, 0, 1, 1], [], []>} : vector<16x96xbf16>, vector<96x32xbf16>, vector<16x32xf32> -> vector<16x32xf32>
    %c0_49 = arith.constant 0 : index
    %c0_50 = arith.constant 0 : index
    %101 = vector.load %arg8[%c0_49, %c0_50] : memref<8x32xf32, #tpu.memory_space<vmem>>, vector<1x32xf32>
    %102 = vector.broadcast %101 : vector<1x32xf32> to vector<16x32xf32>
    %103 = arith.addf %100, %102 : vector<16x32xf32>
    %cst_51 = arith.constant 0.000000e+00 : f32
    %104 = vector.broadcast %cst_51 : f32 to vector<16x32xf32>
    %105 = arith.maximumf %103, %104 : vector<16x32xf32>
    %c1_52 = arith.constant 1 : index
    %c0_53 = arith.constant 0 : index
    %106 = vector.load %arg8[%c1_52, %c0_53] : memref<8x32xf32, #tpu.memory_space<vmem>>, vector<1x32xf32>
    %c2_54 = arith.constant 2 : index
    %c0_55 = arith.constant 0 : index
    %107 = vector.load %arg8[%c2_54, %c0_55] : memref<8x32xf32, #tpu.memory_space<vmem>>, vector<1x32xf32>
    %cst_56 = arith.constant dense<0.000000e+00> : vector<16xf32>
    %108 = vector.multi_reduction <add>, %105, %cst_56 [1] : vector<16x32xf32> to vector<16xf32>
    %109 = vector.shape_cast %108 : vector<16xf32> to vector<16x1xf32>
    %cst_57 = arith.constant 3.200000e+01 : f32
    %110 = vector.broadcast %cst_57 : f32 to vector<16x1xf32>
    %111 = arith.divf %109, %110 : vector<16x1xf32>
    %112 = vector.broadcast %111 : vector<16x1xf32> to vector<16x32xf32>
    %113 = arith.subf %105, %112 : vector<16x32xf32>
    %114 = arith.mulf %113, %113 : vector<16x32xf32>
    %cst_58 = arith.constant dense<0.000000e+00> : vector<16xf32>
    %115 = vector.multi_reduction <add>, %114, %cst_58 [1] : vector<16x32xf32> to vector<16xf32>
    %116 = vector.shape_cast %115 : vector<16xf32> to vector<16x1xf32>
    %cst_59 = arith.constant 3.200000e+01 : f32
    %117 = vector.broadcast %cst_59 : f32 to vector<16x1xf32>
    %118 = arith.divf %116, %117 : vector<16x1xf32>
    %119 = vector.broadcast %111 : vector<16x1xf32> to vector<16x32xf32>
    %120 = arith.subf %105, %119 : vector<16x32xf32>
    %cst_60 = arith.constant 9.99999974E-6 : f32
    %121 = vector.broadcast %cst_60 : f32 to vector<16x1xf32>
    %122 = arith.addf %118, %121 : vector<16x1xf32>
    %123 = math.rsqrt %122 : vector<16x1xf32>
    %124 = vector.broadcast %123 : vector<16x1xf32> to vector<16x32xf32>
    %125 = arith.mulf %120, %124 : vector<16x32xf32>
    %126 = vector.broadcast %106 : vector<1x32xf32> to vector<16x32xf32>
    %127 = arith.mulf %125, %126 : vector<16x32xf32>
    %128 = vector.broadcast %107 : vector<1x32xf32> to vector<16x32xf32>
    %129 = arith.addf %127, %128 : vector<16x32xf32>
    %c1_61 = arith.constant 1 : index
    %c0_62 = arith.constant 0 : index
    %130 = vector.load %arg14[%c1_61, %c0_62] : memref<18x32xf32, #tpu.memory_space<vmem>>, vector<16x32xf32>
    tpu.vector_store %arg14[%c1_61, %c0_62], %129 {strides = array<i32>} : memref<18x32xf32, #tpu.memory_space<vmem>>, vector<16x32xf32>,
    %c0_63 = arith.constant 0 : index
    %c0_64 = arith.constant 0 : index
    %131 = vector.load %arg14[%c0_63, %c0_64] : memref<18x32xf32, #tpu.memory_space<vmem>>, vector<16x32xf32>
    %c1_65 = arith.constant 1 : index
    %c0_66 = arith.constant 0 : index
    %132 = vector.load %arg14[%c1_65, %c0_66] : memref<18x32xf32, #tpu.memory_space<vmem>>, vector<16x32xf32>
    %c2_67 = arith.constant 2 : index
    %c0_68 = arith.constant 0 : index
    %133 = vector.load %arg14[%c2_67, %c0_68] : memref<18x32xf32, #tpu.memory_space<vmem>>, vector<16x32xf32>
    %134 = tpu.concatenate %131, %132, %133 in 1 : vector<16x32xf32>, vector<16x32xf32>, vector<16x32xf32> -> vector<16x96xf32>
    %135 = arith.truncf %134 : vector<16x96xf32> to vector<16x96xbf16>
    %c0_69 = arith.constant 0 : index
    %c0_70 = arith.constant 0 : index
    %136 = vector.load %arg7[%c0_69, %c0_70] : memref<96x32xbf16, #tpu.memory_space<vmem>>, vector<96x32xbf16>
    %cst_71 = arith.constant dense<0.000000e+00> : vector<16x32xf32>
    %137 = tpu.matmul %135, %136, %cst_71 {dimension_numbers = #tpu.dot_dimension_numbers<[1], [0], [0], [1], [0, 0, 1, 1], [], []>} : vector<16x96xbf16>, vector<96x32xbf16>, vector<16x32xf32> -> vector<16x32xf32>
    %c3_72 = arith.constant 3 : index
    %c0_73 = arith.constant 0 : index
    %138 = vector.load %arg8[%c3_72, %c0_73] : memref<8x32xf32, #tpu.memory_space<vmem>>, vector<1x32xf32>
    %139 = vector.broadcast %138 : vector<1x32xf32> to vector<16x32xf32>
    %140 = arith.addf %137, %139 : vector<16x32xf32>
    %cst_74 = arith.constant 0.000000e+00 : f32
    %141 = vector.broadcast %cst_74 : f32 to vector<16x32xf32>
    %142 = arith.maximumf %140, %141 : vector<16x32xf32>
    %c4_75 = arith.constant 4 : index
    %c0_76 = arith.constant 0 : index
    %143 = vector.load %arg8[%c4_75, %c0_76] : memref<8x32xf32, #tpu.memory_space<vmem>>, vector<1x32xf32>
    %c5_77 = arith.constant 5 : index
    %c0_78 = arith.constant 0 : index
    %144 = vector.load %arg8[%c5_77, %c0_78] : memref<8x32xf32, #tpu.memory_space<vmem>>, vector<1x32xf32>
    %cst_79 = arith.constant dense<0.000000e+00> : vector<16xf32>
    %145 = vector.multi_reduction <add>, %142, %cst_79 [1] : vector<16x32xf32> to vector<16xf32>
    %146 = vector.shape_cast %145 : vector<16xf32> to vector<16x1xf32>
    %cst_80 = arith.constant 3.200000e+01 : f32
    %147 = vector.broadcast %cst_80 : f32 to vector<16x1xf32>
    %148 = arith.divf %146, %147 : vector<16x1xf32>
    %149 = vector.broadcast %148 : vector<16x1xf32> to vector<16x32xf32>
    %150 = arith.subf %142, %149 : vector<16x32xf32>
    %151 = arith.mulf %150, %150 : vector<16x32xf32>
    %cst_81 = arith.constant dense<0.000000e+00> : vector<16xf32>
    %152 = vector.multi_reduction <add>, %151, %cst_81 [1] : vector<16x32xf32> to vector<16xf32>
    %153 = vector.shape_cast %152 : vector<16xf32> to vector<16x1xf32>
    %cst_82 = arith.constant 3.200000e+01 : f32
    %154 = vector.broadcast %cst_82 : f32 to vector<16x1xf32>
    %155 = arith.divf %153, %154 : vector<16x1xf32>
    %156 = vector.broadcast %148 : vector<16x1xf32> to vector<16x32xf32>
    %157 = arith.subf %142, %156 : vector<16x32xf32>
    %cst_83 = arith.constant 9.99999974E-6 : f32
    %158 = vector.broadcast %cst_83 : f32 to vector<16x1xf32>
    %159 = arith.addf %155, %158 : vector<16x1xf32>
    %160 = math.rsqrt %159 : vector<16x1xf32>
    %161 = vector.broadcast %160 : vector<16x1xf32> to vector<16x32xf32>
    %162 = arith.mulf %157, %161 : vector<16x32xf32>
    %163 = vector.broadcast %143 : vector<1x32xf32> to vector<16x32xf32>
    %164 = arith.mulf %162, %163 : vector<16x32xf32>
    %165 = vector.broadcast %144 : vector<1x32xf32> to vector<16x32xf32>
    %166 = arith.addf %164, %165 : vector<16x32xf32>
    %c6_84 = arith.constant 6 : index
    %c0_85 = arith.constant 0 : index
    %167 = vector.load %arg8[%c6_84, %c0_85] : memref<8x32xf32, #tpu.memory_space<vmem>>, vector<1x32xf32>
    %cst_86 = arith.constant dense<0.000000e+00> : vector<1x16xf32>
    %168 = tpu.matmul %167, %166, %cst_86 {dimension_numbers = #tpu.dot_dimension_numbers<[1], [1], [0], [0], [0, 0, 1, 0], [], []>} : vector<1x32xf32>, vector<16x32xf32>, vector<1x16xf32> -> vector<1x16xf32>
    %c7_87 = arith.constant 7 : index
    %c0_88 = arith.constant 0 : index
    %169 = vector.load %arg8[%c7_87, %c0_88] : memref<8x32xf32, #tpu.memory_space<vmem>>, vector<1x1xf32>
    %170 = vector.broadcast %169 : vector<1x1xf32> to vector<1x16xf32>
    %171 = arith.addf %168, %170 : vector<1x16xf32>
    %cst_89 = arith.constant 0.000000e+00 : f32
    %172 = vector.broadcast %cst_89 : f32 to vector<1x16xf32>
    %173 = arith.select %4, %172, %171 : vector<1x16xi1>, vector<1x16xf32>
    %cst_90 = arith.constant 1.000000e+00 : f32
    %174 = vector.broadcast %cst_90 : f32 to vector<1x16xf32>
    %175 = arith.mulf %173, %174 : vector<1x16xf32>
    %c0_91 = arith.constant 0 : index
    %c0_92 = arith.constant 0 : index
    %c0_93 = arith.constant 0 : index
    %176 = vector.load %arg12[%c0_91, %c0_92, %c0_93] : memref<1x1x16xf32, #tpu.memory_space<vmem>>, vector<1x1x16xf32>
    %177 = vector.shape_cast %176 : vector<1x1x16xf32> to vector<1x16xf32>
    %178 = vector.shape_cast %175 : vector<1x16xf32> to vector<1x1x16xf32>
    tpu.vector_store %arg12[%c0_91, %c0_92, %c0_93], %178 {strides = array<i32>} : memref<1x1x16xf32, #tpu.memory_space<vmem>>, vector<1x1x16xf32>,
    %c0_94 = arith.constant 0 : index
    %c0_95 = arith.constant 0 : index
    %179 = vector.load %arg9[%c0_94, %c0_95] : memref<15x1xf32, #tpu.memory_space<vmem>>, vector<15x1xf32>
    %180 = vector.broadcast %179 : vector<15x1xf32> to vector<15x16xf32>
    %181 = vector.broadcast %175 : vector<1x16xf32> to vector<15x16xf32>
    %182 = arith.cmpf olt, %180, %181 : vector<15x16xf32>
    %183 = arith.extui %182 : vector<15x16xi1> to vector<15x16xi32>
    %184 = arith.sitofp %183 : vector<15x16xi32> to vector<15x16xf32>
    %cst_96 = arith.constant dense<0.000000e+00> : vector<16xf32>
    %185 = vector.multi_reduction <add>, %184, %cst_96 [0] : vector<15x16xf32> to vector<16xf32>
    %186 = vector.shape_cast %185 : vector<16xf32> to vector<1x16xf32>
    %187 = arith.fptosi %186 : vector<1x16xf32> to vector<1x16xi32>
    %188 = tpu.iota {dimensions = array<i32: 0>} : vector<16x16xi32>
    %189 = vector.broadcast %187 : vector<1x16xi32> to vector<16x16xi32>
    %190 = arith.cmpi eq, %188, %189 : vector<16x16xi32>
    %191 = arith.extui %190 : vector<16x16xi1> to vector<16x16xi32>
    %192 = arith.sitofp %191 : vector<16x16xi32> to vector<16x16xf32>
    %193 = arith.truncf %192 : vector<16x16xf32> to vector<16x16xbf16>
    %c0_97 = arith.constant 0 : index
    %c0_98 = arith.constant 0 : index
    %194 = vector.load %arg10[%c0_97, %c0_98] : memref<16x32xf32, #tpu.memory_space<vmem>>, vector<16x32xf32>
    %195 = arith.truncf %194 : vector<16x32xf32> to vector<16x32xbf16>
    %cst_99 = arith.constant dense<0.000000e+00> : vector<16x32xf32>
    %196 = tpu.matmul %193, %195, %cst_99 {dimension_numbers = #tpu.dot_dimension_numbers<[0], [0], [1], [1], [0, 1, 1, 1], [], []>} : vector<16x16xbf16>, vector<16x32xbf16>, vector<16x32xf32> -> vector<16x32xf32>
    %197 = vector.extract_strided_slice %10 {offsets = [1, 0], sizes = [16, 32], strides = [1, 1]} : vector<18x32xf32> to vector<16x32xf32>
    %198 = arith.addf %197, %196 : vector<16x32xf32>
    %cst_100 = arith.constant 0.000000e+00 : f32
    %199 = vector.broadcast %cst_100 : f32 to vector<1x32xf32>
    %c0_101 = arith.constant 0 : index
    %c0_102 = arith.constant 0 : index
    %c0_103 = arith.constant 0 : index
    %200 = vector.load %arg13[%c0_101, %c0_102, %c0_103] : memref<1x18x32xf32, #tpu.memory_space<vmem>>, vector<1x1x32xf32>
    %201 = vector.shape_cast %200 : vector<1x1x32xf32> to vector<1x32xf32>
    %202 = vector.shape_cast %199 : vector<1x32xf32> to vector<1x1x32xf32>
    tpu.vector_store %arg13[%c0_101, %c0_102, %c0_103], %202 {strides = array<i32>} : memref<1x18x32xf32, #tpu.memory_space<vmem>>, vector<1x1x32xf32>,
    %cst_104 = arith.constant 0.000000e+00 : f32
    %203 = vector.broadcast %cst_104 : f32 to vector<1x32xf32>
    %c0_105 = arith.constant 0 : index
    %c17_106 = arith.constant 17 : index
    %c0_107 = arith.constant 0 : index
    %204 = vector.load %arg13[%c0_105, %c17_106, %c0_107] : memref<1x18x32xf32, #tpu.memory_space<vmem>>, vector<1x1x32xf32>
    %205 = vector.shape_cast %204 : vector<1x1x32xf32> to vector<1x32xf32>
    %206 = vector.shape_cast %203 : vector<1x32xf32> to vector<1x1x32xf32>
    tpu.vector_store %arg13[%c0_105, %c17_106, %c0_107], %206 {strides = array<i32>} : memref<1x18x32xf32, #tpu.memory_space<vmem>>, vector<1x1x32xf32>,
    %c0_108 = arith.constant 0 : index
    %c1_109 = arith.constant 1 : index
    %c0_110 = arith.constant 0 : index
    %207 = vector.load %arg13[%c0_108, %c1_109, %c0_110] : memref<1x18x32xf32, #tpu.memory_space<vmem>>, vector<1x16x32xf32>
    %208 = vector.shape_cast %207 : vector<1x16x32xf32> to vector<16x32xf32>
    %209 = vector.shape_cast %198 : vector<16x32xf32> to vector<1x16x32xf32>
    tpu.vector_store %arg13[%c0_108, %c1_109, %c0_110], %209 {strides = array<i32>} : memref<1x18x32xf32, #tpu.memory_space<vmem>>, vector<1x16x32xf32>,
    return
  }
  func.func @transform_0(%arg0: i32, %arg1: memref<2xi32, #tpu.memory_space<smem>>) -> (i32, i32, i32) {
    %c0_i32 = arith.constant 0 : i32
    %c0_i32_0 = arith.constant 0 : i32
    %c0_i32_1 = arith.constant 0 : i32
    return %arg0, %c0_i32, %c0_i32_0 : i32, i32, i32
  }
  func.func @transform_1(%arg0: i32, %arg1: memref<2xi32, #tpu.memory_space<smem>>) -> (i32, i32) {
    %c0_i32 = arith.constant 0 : i32
    %c0_i32_0 = arith.constant 0 : i32
    %c0_i32_1 = arith.constant 0 : i32
    return %c0_i32, %c0_i32_0 : i32, i32
  }
  func.func @transform_2(%arg0: i32, %arg1: memref<2xi32, #tpu.memory_space<smem>>) -> (i32, i32) {
    %c0_i32 = arith.constant 0 : i32
    %c0_i32_0 = arith.constant 0 : i32
    %c0_i32_1 = arith.constant 0 : i32
    return %c0_i32, %c0_i32_0 : i32, i32
  }
  func.func @transform_3(%arg0: i32, %arg1: memref<2xi32, #tpu.memory_space<smem>>) -> (i32, i32) {
    %c0_i32 = arith.constant 0 : i32
    %c0_i32_0 = arith.constant 0 : i32
    %c0_i32_1 = arith.constant 0 : i32
    return %c0_i32, %c0_i32_0 : i32, i32
  }
  func.func @transform_4(%arg0: i32, %arg1: memref<2xi32, #tpu.memory_space<smem>>) -> (i32, i32) {
    %c0_i32 = arith.constant 0 : i32
    %c0_i32_0 = arith.constant 0 : i32
    %c0_i32_1 = arith.constant 0 : i32
    return %c0_i32, %c0_i32_0 : i32, i32
  }
  func.func @transform_5(%arg0: i32, %arg1: memref<2xi32, #tpu.memory_space<smem>>) -> (i32, i32) {
    %c0_i32 = arith.constant 0 : i32
    %c0_i32_0 = arith.constant 0 : i32
    %c0_i32_1 = arith.constant 0 : i32
    return %c0_i32, %c0_i32_0 : i32, i32
  }
  func.func @transform_6(%arg0: i32, %arg1: memref<2xi32, #tpu.memory_space<smem>>) -> (i32, i32) {
    %c0_i32 = arith.constant 0 : i32
    %c0_i32_0 = arith.constant 0 : i32
    %c0_i32_1 = arith.constant 0 : i32
    return %c0_i32, %c0_i32_0 : i32, i32
  }
  func.func @transform_7(%arg0: i32, %arg1: memref<2xi32, #tpu.memory_space<smem>>) -> (i32, i32) {
    %c0_i32 = arith.constant 0 : i32
    %c0_i32_0 = arith.constant 0 : i32
    %c0_i32_1 = arith.constant 0 : i32
    return %c0_i32, %c0_i32_0 : i32, i32
  }
  func.func @transform_8(%arg0: i32, %arg1: memref<2xi32, #tpu.memory_space<smem>>) -> (i32, i32) {
    %c0_i32 = arith.constant 0 : i32
    %c0_i32_0 = arith.constant 0 : i32
    %c0_i32_1 = arith.constant 0 : i32
    return %c0_i32, %c0_i32_0 : i32, i32
  }
  func.func @transform_9(%arg0: i32, %arg1: memref<2xi32, #tpu.memory_space<smem>>) -> (i32, i32, i32) {
    %c0_i32 = arith.constant 0 : i32
    %c0_i32_0 = arith.constant 0 : i32
    %c0_i32_1 = arith.constant 0 : i32
    return %arg0, %c0_i32, %c0_i32_0 : i32, i32, i32
  }
  func.func @transform_10(%arg0: i32, %arg1: memref<2xi32, #tpu.memory_space<smem>>) -> (i32, i32, i32) {
    %c0_i32 = arith.constant 0 : i32
    %c0_i32_0 = arith.constant 0 : i32
    %c0_i32_1 = arith.constant 0 : i32
    return %arg0, %c0_i32, %c0_i32_0 : i32, i32, i32
  }
  func.func @transform_11(%arg0: i32, %arg1: memref<2xi32, #tpu.memory_space<smem>>) -> (i32, i32, i32) {
    %c0_i32 = arith.constant 0 : i32
    %c0_i32_0 = arith.constant 0 : i32
    %c0_i32_1 = arith.constant 0 : i32
    return %arg0, %c0_i32, %c0_i32_0 : i32, i32, i32
  }
}

</mosaic_0001>

<llo_original>
// kernel: tpu_custom_call.1
$region0: #{tpu_custom_call.1}
  #allocation0 [shape = 'u32[]', space=smem, size = 0x4, offset = 0x4, fixed_abs, tag = 'smem constant byte address 0x4 - core index']
  #allocation1 [shape = 'u32[72,128]{1,0:T(1,128)}', space=vmem, size = 0x9000, scoped, tag = 'internal scratch']
  #allocation2 [shape = 'f32[18,32]{1,0:T(8,128)}', space=vmem, size = 0x3000, scoped, tag = 'scratch operand']
  #allocation3 [shape = 's32[1]{0}', space=sflag, size = 0x4, scoped, tag = 'scoped memory for tpu_custom_call.1']
  #allocation4 [shape = 'u8[512]{0}', space=smem, size = 0x200, scoped, tag = 'prefetched SMEM operand 0']
  %s0 = inlined_call_operand.vmem [shape: s32[2], index: 0, kind: input, shape index: {}]
  %s1 = inlined_call_operand.vmem [shape: f32[2,18,32], index: 1, kind: input, shape index: {}]
  %s2 = inlined_call_operand.vmem [shape: bf16[96,32], index: 2, kind: input, shape index: {}]
  %s3 = inlined_call_operand.vmem [shape: bf16[96,32], index: 3, kind: input, shape index: {}]
  %s4 = inlined_call_operand.vmem [shape: f32[8,32], index: 4, kind: input, shape index: {}]
  %s5 = inlined_call_operand.vmem [shape: bf16[96,32], index: 5, kind: input, shape index: {}]
  %s6 = inlined_call_operand.vmem [shape: bf16[96,32], index: 6, kind: input, shape index: {}]
  %s7 = inlined_call_operand.vmem [shape: f32[8,32], index: 7, kind: input, shape index: {}]
  %s8 = inlined_call_operand.vmem [shape: f32[15,1], index: 8, kind: input, shape index: {}]
  %s9 = inlined_call_operand.vmem [shape: f32[16,32], index: 9, kind: input, shape index: {}]
  %s10 = inlined_call_operand.hbm [shape: f32[2,1,16], index: 10, kind: output, shape index: {0}]
  %s11 = inlined_call_operand.hbm [shape: f32[2,1,16], index: 11, kind: output, shape index: {1}]
  %s12 = inlined_call_operand.vmem [shape: f32[2,18,32], index: 12, kind: output, shape index: {2}]
  %13 = xla_tuple %s10, %s11, %s12
  %s14 = sld [smem:[#allocation0]]
  $region85: #{tpu_custom_call.1} parent=0
    _
  %s16 = ssub.s32 1, %s14
  %s17 = scalar_select 0, %s16, %s14
  %s19 = sshll.u32 %s0, 4
  %s20 = int_to_ptr.vmem [resolvable:$true] %s19
  %22 = dma.vmem_to_smem %s20, 16, [#allocation4], [#allocation3]
  %24 = dma.done [#allocation3], 16
  %25 = sfence
  $region1: #{tpu_custom_call.1} parent=0
    #allocation5 [shape = 'u8[1024]{0}', space=vmem, size = 0x400, scoped, tag = 'output window, operand 0']
    #allocation6 [shape = 's32[2]{0}', space=sflag, size = 0x8, scoped, tag = 'scoped memory for tpu_custom_call.1']
    #allocation7 [shape = 'u8[1024]{0}', space=vmem, size = 0x400, scoped, tag = 'output window, operand 1']
    #allocation8 [shape = 's32[2]{0}', space=sflag, size = 0x8, scoped, tag = 'scoped memory for tpu_custom_call.1']
    %26 = vsyncpa [#allocation6], 0
    %s27 = scalar_lea.sflag [#allocation6], 1
    %28 = vsyncpa %s27, 0
    %29 = vsyncpa [#allocation8], 0
    %s30 = scalar_lea.sflag [#allocation8], 1
    %31 = vsyncpa %s30, 0
    loop: start=0, step=1, limit=4
    $region2: #{tpu_custom_call.1} parent=1 // loop_pre_header
      _
    $region3: #{tpu_custom_call.1} parent=1 // loop_header
      %s33 = sphi 0, %s37
      %p34 = scmp.ge.s32.totalorder %s33, 4
      %s43 = sphi 0, %s45
      %s46 = sphi 0, %s43
      %s47 = sphi 0, %s46
      %s63 = sphi 0, %s47
      %s67 = sphi 0, %s67
      %s69 = sphi 0, %s67
      %s70 = sphi 0, %s69
      %s84 = sphi 0, %s70
      %s88 = sphi 0, %s88
      %s90 = sphi 0, %s88
      %s91 = sphi 0, %s90
      %s105 = sphi 0, %s91
      %s109 = sphi 0, %s109
      %s111 = sphi 0, %s109
      %s112 = sphi 0, %s111
      %s126 = sphi 0, %s112
      %s130 = sphi 0, %s130
      %s132 = sphi 0, %s130
      %s133 = sphi 0, %s132
      %s147 = sphi 0, %s133
      %s151 = sphi 0, %s151
      %s153 = sphi 0, %s151
      %s154 = sphi 0, %s153
      %s168 = sphi 0, %s154
      %s172 = sphi 0, %s172
      %s174 = sphi 0, %s172
      %s175 = sphi 0, %s174
      %s189 = sphi 0, %s175
      %s193 = sphi 0, %s193
      %s195 = sphi 0, %s193
      %s196 = sphi 0, %s195
      %s210 = sphi 0, %s196
      %s214 = sphi 0, %s214
      %s216 = sphi 0, %s214
      %s217 = sphi 0, %s216
      %s231 = sphi 0, %s217
      %s237 = sphi 0, %s239
      %s240 = sphi 0, %s237
      %s241 = sphi 0, %s240
      %s257 = sphi 0, %s241
      %s263 = sphi 0, %s265
      %s266 = sphi 0, %s263
      %s267 = sphi 0, %s266
      %s283 = sphi 0, %s267
      %s289 = sphi 0, %s291
      %s292 = sphi 0, %s289
      %s293 = sphi 0, %s292
      %s309 = sphi 0, %s293
    $region4: #{tpu_custom_call.1} parent=1 // loop_header_branch
      %36 = sbr.rel (%p34) target = $region8
    $region5: #{tpu_custom_call.1} parent=1 // loop_body
      %s38 = ssub.s32 %s33, 1
      %s39 = ssub.s32 %s33, 2
      %s40 = sadd.s32 %s33, 1
      %s41 = ssub.s32 %s33, %s40
      %p42 = scmp.eq.s32.totalorder %s41, 0
      %s44 = sadd.s32 %s43, 1
      %s45 = scalar_select %p42, %s43, %s44
      %p48 = pneg %p42
      %p49 = scmp.eq.s32.totalorder %s33, 1
      %p50 = por %p48, %p49
      %p51 = scmp.ne.s32.totalorder %s43, %s46
      %p52 = scmp.eq.s32.totalorder %s33, 0
      %p53 = por %p51, %p52
      %p54 = scmp.ne.s32.totalorder %s43, %s46
      %p55 = scmp.eq.s32.totalorder %s38, 1
      %p56 = por %p54, %p55
      %p57 = scmp.ne.s32.totalorder %s46, %s47
      %p58 = scmp.eq.s32.totalorder %s38, 0
      %p59 = por %p57, %p58
      %p60 = scmp.ne.s32.totalorder %s46, %s47
      %p61 = scmp.eq.s32.totalorder %s39, 1
      %p62 = por %p60, %p61
      %p64 = scmp.ne.s32.totalorder %s47, %s63
      %p65 = scmp.eq.s32.totalorder %s39, 0
      %p66 = por %p64, %p65
      %s68 = sadd.s32 %s67, 1
      %p71 = scmp.eq.s32.totalorder %s33, 1
      %p72 = scmp.ne.s32.totalorder %s67, %s69
      %p73 = scmp.eq.s32.totalorder %s33, 0
      %p74 = por %p72, %p73
      %p75 = scmp.ne.s32.totalorder %s67, %s69
      %p76 = scmp.eq.s32.totalorder %s38, 1
      %p77 = por %p75, %p76
      %p78 = scmp.ne.s32.totalorder %s69, %s70
      %p79 = scmp.eq.s32.totalorder %s38, 0
      %p80 = por %p78, %p79
      %p81 = scmp.ne.s32.totalorder %s69, %s70
      %p82 = scmp.eq.s32.totalorder %s39, 1
      %p83 = por %p81, %p82
      %p85 = scmp.ne.s32.totalorder %s70, %s84
      %p86 = scmp.eq.s32.totalorder %s39, 0
      %p87 = por %p85, %p86
      %s89 = sadd.s32 %s88, 1
      %p92 = scmp.eq.s32.totalorder %s33, 1
      %p93 = scmp.ne.s32.totalorder %s88, %s90
      %p94 = scmp.eq.s32.totalorder %s33, 0
      %p95 = por %p93, %p94
      %p96 = scmp.ne.s32.totalorder %s88, %s90
      %p97 = scmp.eq.s32.totalorder %s38, 1
      %p98 = por %p96, %p97
      %p99 = scmp.ne.s32.totalorder %s90, %s91
      %p100 = scmp.eq.s32.totalorder %s38, 0
      %p101 = por %p99, %p100
      %p102 = scmp.ne.s32.totalorder %s90, %s91
      %p103 = scmp.eq.s32.totalorder %s39, 1
      %p104 = por %p102, %p103
      %p106 = scmp.ne.s32.totalorder %s91, %s105
      %p107 = scmp.eq.s32.totalorder %s39, 0
      %p108 = por %p106, %p107
      %s110 = sadd.s32 %s109, 1
      %p113 = scmp.eq.s32.totalorder %s33, 1
      %p114 = scmp.ne.s32.totalorder %s109, %s111
      %p115 = scmp.eq.s32.totalorder %s33, 0
      %p116 = por %p114, %p115
      %p117 = scmp.ne.s32.totalorder %s109, %s111
      %p118 = scmp.eq.s32.totalorder %s38, 1
      %p119 = por %p117, %p118
      %p120 = scmp.ne.s32.totalorder %s111, %s112
      %p121 = scmp.eq.s32.totalorder %s38, 0
      %p122 = por %p120, %p121
      %p123 = scmp.ne.s32.totalorder %s111, %s112
      %p124 = scmp.eq.s32.totalorder %s39, 1
      %p125 = por %p123, %p124
      %p127 = scmp.ne.s32.totalorder %s112, %s126
      %p128 = scmp.eq.s32.totalorder %s39, 0
      %p129 = por %p127, %p128
      %s131 = sadd.s32 %s130, 1
      %p134 = scmp.eq.s32.totalorder %s33, 1
      %p135 = scmp.ne.s32.totalorder %s130, %s132
      %p136 = scmp.eq.s32.totalorder %s33, 0
      %p137 = por %p135, %p136
      %p138 = scmp.ne.s32.totalorder %s130, %s132
      %p139 = scmp.eq.s32.totalorder %s38, 1
      %p140 = por %p138, %p139
      %p141 = scmp.ne.s32.totalorder %s132, %s133
      %p142 = scmp.eq.s32.totalorder %s38, 0
      %p143 = por %p141, %p142
      %p144 = scmp.ne.s32.totalorder %s132, %s133
      %p145 = scmp.eq.s32.totalorder %s39, 1
      %p146 = por %p144, %p145
      %p148 = scmp.ne.s32.totalorder %s133, %s147
      %p149 = scmp.eq.s32.totalorder %s39, 0
      %p150 = por %p148, %p149
      %s152 = sadd.s32 %s151, 1
      %p155 = scmp.eq.s32.totalorder %s33, 1
      %p156 = scmp.ne.s32.totalorder %s151, %s153
      %p157 = scmp.eq.s32.totalorder %s33, 0
      %p158 = por %p156, %p157
      %p159 = scmp.ne.s32.totalorder %s151, %s153
      %p160 = scmp.eq.s32.totalorder %s38, 1
      %p161 = por %p159, %p160
      %p162 = scmp.ne.s32.totalorder %s153, %s154
      %p163 = scmp.eq.s32.totalorder %s38, 0
      %p164 = por %p162, %p163
      %p165 = scmp.ne.s32.totalorder %s153, %s154
      %p166 = scmp.eq.s32.totalorder %s39, 1
      %p167 = por %p165, %p166
      %p169 = scmp.ne.s32.totalorder %s154, %s168
      %p170 = scmp.eq.s32.totalorder %s39, 0
      %p171 = por %p169, %p170
      %s173 = sadd.s32 %s172, 1
      %p176 = scmp.eq.s32.totalorder %s33, 1
      %p177 = scmp.ne.s32.totalorder %s172, %s174
      %p178 = scmp.eq.s32.totalorder %s33, 0
      %p179 = por %p177, %p178
      %p180 = scmp.ne.s32.totalorder %s172, %s174
      %p181 = scmp.eq.s32.totalorder %s38, 1
      %p182 = por %p180, %p181
      %p183 = scmp.ne.s32.totalorder %s174, %s175
      %p184 = scmp.eq.s32.totalorder %s38, 0
      %p185 = por %p183, %p184
      %p186 = scmp.ne.s32.totalorder %s174, %s175
      %p187 = scmp.eq.s32.totalorder %s39, 1
      %p188 = por %p186, %p187
      %p190 = scmp.ne.s32.totalorder %s175, %s189
      %p191 = scmp.eq.s32.totalorder %s39, 0
      %p192 = por %p190, %p191
      %s194 = sadd.s32 %s193, 1
      %p197 = scmp.eq.s32.totalorder %s33, 1
      %p198 = scmp.ne.s32.totalorder %s193, %s195
      %p199 = scmp.eq.s32.totalorder %s33, 0
      %p200 = por %p198, %p199
      %p201 = scmp.ne.s32.totalorder %s193, %s195
      %p202 = scmp.eq.s32.totalorder %s38, 1
      %p203 = por %p201, %p202
      %p204 = scmp.ne.s32.totalorder %s195, %s196
      %p205 = scmp.eq.s32.totalorder %s38, 0
      %p206 = por %p204, %p205
      %p207 = scmp.ne.s32.totalorder %s195, %s196
      %p208 = scmp.eq.s32.totalorder %s39, 1
      %p209 = por %p207, %p208
      %p211 = scmp.ne.s32.totalorder %s196, %s210
      %p212 = scmp.eq.s32.totalorder %s39, 0
      %p213 = por %p211, %p212
      %s215 = sadd.s32 %s214, 1
      %p218 = scmp.eq.s32.totalorder %s33, 1
      %p219 = scmp.ne.s32.totalorder %s214, %s216
      %p220 = scmp.eq.s32.totalorder %s33, 0
      %p221 = por %p219, %p220
      %p222 = scmp.ne.s32.totalorder %s214, %s216
      %p223 = scmp.eq.s32.totalorder %s38, 1
      %p224 = por %p222, %p223
      %p225 = scmp.ne.s32.totalorder %s216, %s217
      %p226 = scmp.eq.s32.totalorder %s38, 0
      %p227 = por %p225, %p226
      %p228 = scmp.ne.s32.totalorder %s216, %s217
      %p229 = scmp.eq.s32.totalorder %s39, 1
      %p230 = por %p228, %p229
      %p232 = scmp.ne.s32.totalorder %s217, %s231
      %p233 = scmp.eq.s32.totalorder %s39, 0
      %p234 = por %p232, %p233
      %s235 = ssub.s32 %s33, %s40
      %p236 = scmp.eq.s32.totalorder %s235, 0
      %s238 = sadd.s32 %s237, 1
      %s239 = scalar_select %p236, %s237, %s238
      %p242 = pneg %p236
      %p243 = scmp.eq.s32.totalorder %s33, 1
      %p244 = por %p242, %p243
      %p245 = scmp.ne.s32.totalorder %s237, %s240
      %p246 = scmp.eq.s32.totalorder %s33, 0
      %p247 = por %p245, %p246
      %p248 = scmp.ne.s32.totalorder %s237, %s240
      %p249 = scmp.eq.s32.totalorder %s38, 1
      %p250 = por %p248, %p249
      %p251 = scmp.ne.s32.totalorder %s240, %s241
      %p252 = scmp.eq.s32.totalorder %s38, 0
      %p253 = por %p251, %p252
      %p254 = scmp.ne.s32.totalorder %s240, %s241
      %p255 = scmp.eq.s32.totalorder %s39, 1
      %p256 = por %p254, %p255
      %p258 = scmp.ne.s32.totalorder %s241, %s257
      %p259 = scmp.eq.s32.totalorder %s39, 0
      %p260 = por %p258, %p259
      %s261 = ssub.s32 %s33, %s40
      %p262 = scmp.eq.s32.totalorder %s261, 0
      %s264 = sadd.s32 %s263, 1
      %s265 = scalar_select %p262, %s263, %s264
      %p268 = pneg %p262
      %p269 = scmp.eq.s32.totalorder %s33, 1
      %p270 = por %p268, %p269
      %p271 = scmp.ne.s32.totalorder %s263, %s266
      %p272 = scmp.eq.s32.totalorder %s33, 0
      %p273 = por %p271, %p272
      %p274 = scmp.ne.s32.totalorder %s263, %s266
      %p275 = scmp.eq.s32.totalorder %s38, 1
      %p276 = por %p274, %p275
      %p277 = scmp.ne.s32.totalorder %s266, %s267
      %p278 = scmp.eq.s32.totalorder %s38, 0
      %p279 = por %p277, %p278
      %p280 = scmp.ne.s32.totalorder %s266, %s267
      %p281 = scmp.eq.s32.totalorder %s39, 1
      %p282 = por %p280, %p281
      %p284 = scmp.ne.s32.totalorder %s267, %s283
      %p285 = scmp.eq.s32.totalorder %s39, 0
      %p286 = por %p284, %p285
      %s287 = ssub.s32 %s33, %s40
      %p288 = scmp.eq.s32.totalorder %s287, 0
      %s290 = sadd.s32 %s289, 1
      %s291 = scalar_select %p288, %s289, %s290
      %p294 = pneg %p288
      %p295 = scmp.eq.s32.totalorder %s33, 1
      %p296 = por %p294, %p295
      %p297 = scmp.ne.s32.totalorder %s289, %s292
      %p298 = scmp.eq.s32.totalorder %s33, 0
      %p299 = por %p297, %p298
      %p300 = scmp.ne.s32.totalorder %s289, %s292
      %p301 = scmp.eq.s32.totalorder %s38, 1
      %p302 = por %p300, %p301
      %p303 = scmp.ne.s32.totalorder %s292, %s293
      %p304 = scmp.eq.s32.totalorder %s38, 0
      %p305 = por %p303, %p304
      %p306 = scmp.ne.s32.totalorder %s292, %s293
      %p307 = scmp.eq.s32.totalorder %s39, 1
      %p308 = por %p306, %p307
      %p310 = scmp.ne.s32.totalorder %s293, %s309
      %p311 = scmp.eq.s32.totalorder %s39, 0
      %p312 = por %p310, %p311
      %p313 = scmp.le.s32.totalorder 1, %s33
      %p314 = scmp.lt.s32.totalorder %s33, 3
      %p315 = pnand %p313, %p314
      %p316 = pneg %p315
      // Predicated region
      $region9: #{tpu_custom_call.1} parent=5 // pred_check
        _
      $region10: #{tpu_custom_call.1} parent=5 // pred_check_branch
        %318 = sbr.rel (%p315) target = $region12
      $region11: #{tpu_custom_call.1} parent=5 // pred_region
        %s319 = ssub.s32 %s33, 1
        // Predicated region
        $region13: #{tpu_custom_call.1} parent=11 // pred_check
          %p320 = pneg %p80
        $region14: #{tpu_custom_call.1} parent=11 // pred_check_branch
          %322 = sbr.rel (%p320) target = $region16
        $region15: #{tpu_custom_call.1} parent=11 // pred_region
          _
        $region16: #{tpu_custom_call.1} parent=11 // pred_fallthru
          _
        // Predicated region
        $region17: #{tpu_custom_call.1} parent=11 // pred_check
          %p323 = pneg %p101
        $region18: #{tpu_custom_call.1} parent=11 // pred_check_branch
          %325 = sbr.rel (%p323) target = $region20
        $region19: #{tpu_custom_call.1} parent=11 // pred_region
          _
        $region20: #{tpu_custom_call.1} parent=11 // pred_fallthru
          _
        // Predicated region
        $region21: #{tpu_custom_call.1} parent=11 // pred_check
          %p326 = pneg %p122
        $region22: #{tpu_custom_call.1} parent=11 // pred_check_branch
          %328 = sbr.rel (%p326) target = $region24
        $region23: #{tpu_custom_call.1} parent=11 // pred_region
          _
        $region24: #{tpu_custom_call.1} parent=11 // pred_fallthru
          _
        // Predicated region
        $region25: #{tpu_custom_call.1} parent=11 // pred_check
          %p329 = pneg %p143
        $region26: #{tpu_custom_call.1} parent=11 // pred_check_branch
          %331 = sbr.rel (%p329) target = $region28
        $region27: #{tpu_custom_call.1} parent=11 // pred_region
          _
        $region28: #{tpu_custom_call.1} parent=11 // pred_fallthru
          _
        // Predicated region
        $region29: #{tpu_custom_call.1} parent=11 // pred_check
          %p332 = pneg %p164
        $region30: #{tpu_custom_call.1} parent=11 // pred_check_branch
          %334 = sbr.rel (%p332) target = $region32
        $region31: #{tpu_custom_call.1} parent=11 // pred_region
          _
        $region32: #{tpu_custom_call.1} parent=11 // pred_fallthru
          _
        // Predicated region
        $region33: #{tpu_custom_call.1} parent=11 // pred_check
          %p335 = pneg %p185
        $region34: #{tpu_custom_call.1} parent=11 // pred_check_branch
          %337 = sbr.rel (%p335) target = $region36
        $region35: #{tpu_custom_call.1} parent=11 // pred_region
          _
        $region36: #{tpu_custom_call.1} parent=11 // pred_fallthru
          _
        // Predicated region
        $region37: #{tpu_custom_call.1} parent=11 // pred_check
          %p338 = pneg %p206
        $region38: #{tpu_custom_call.1} parent=11 // pred_check_branch
          %340 = sbr.rel (%p338) target = $region40
        $region39: #{tpu_custom_call.1} parent=11 // pred_region
          _
        $region40: #{tpu_custom_call.1} parent=11 // pred_fallthru
          _
        // Predicated region
        $region41: #{tpu_custom_call.1} parent=11 // pred_check
          %p341 = pneg %p227
        $region42: #{tpu_custom_call.1} parent=11 // pred_check_branch
          %343 = sbr.rel (%p341) target = $region44
        $region43: #{tpu_custom_call.1} parent=11 // pred_region
          _
        $region44: #{tpu_custom_call.1} parent=11 // pred_fallthru
          _
      $region12: #{tpu_custom_call.1} parent=5 // pred_fallthru
        _
      %p344 = scmp.lt.s32.totalorder %s33, 2
      // Predicated region
      $region45: #{tpu_custom_call.1} parent=5 // pred_check
        %p345 = pneg %p344
      $region46: #{tpu_custom_call.1} parent=5 // pred_check_branch
        %347 = sbr.rel (%p345) target = $region48
      $region47: #{tpu_custom_call.1} parent=5 // pred_region
        // Predicated region
        $region49: #{tpu_custom_call.1} parent=47 // pred_check
          %p348 = pneg %p53
        $region50: #{tpu_custom_call.1} parent=47 // pred_check_branch
          %350 = sbr.rel (%p348) target = $region52
        $region51: #{tpu_custom_call.1} parent=47 // pred_region
          %p351 = scmp.lt.s32.totalorder %s33, 1
          %s352 = scalar_select %p351, %s33, 1
          %s353 = smul.addr %s352, 3
          %s354 = smul.addr %s353, 8
          %s355 = scalar_lea.vmem %s1, %s354
        $region52: #{tpu_custom_call.1} parent=47 // pred_fallthru
          _
      $region48: #{tpu_custom_call.1} parent=5 // pred_fallthru
        _
      %p356 = scmp.le.s32.totalorder 1, %s33
      %p357 = scmp.lt.s32.totalorder %s33, 3
      %p358 = pnand %p356, %p357
      %p359 = pneg %p358
      // Predicated region
      $region53: #{tpu_custom_call.1} parent=5 // pred_check
        _
      $region54: #{tpu_custom_call.1} parent=5 // pred_check_branch
        %361 = sbr.rel (%p358) target = $region56
      $region55: #{tpu_custom_call.1} parent=5 // pred_region
        %s362 = ssub.s32 %s33, 1
        %p363 = scmp.lt.s32.totalorder %s38, 1
        %s364 = scalar_select %p363, %s38, 1
        %s365 = smul.addr %s364, 3
        %s366 = smul.addr %s365, 8
        %s367 = scalar_lea.vmem %s1, %s366
        %p368 = pneg %p59
        %p369 = pneg %p56
        %p370 = pneg %p80
        %p371 = pneg %p77
        %p372 = pneg %p101
        %p373 = pneg %p98
        %p374 = pneg %p122
        %p375 = pneg %p119
        %p376 = pneg %p143
        %p377 = pneg %p140
        %p378 = pneg %p164
        %p379 = pneg %p161
        %p380 = pneg %p185
        %p381 = pneg %p182
        %p382 = pneg %p206
        %p383 = pneg %p203
        %p384 = pneg %p227
        %p385 = pneg %p224
        %p386 = pneg %p253
        %p387 = pneg %p250
        %s388 = sand.u32 %s240, 1
        %s389 = scalar_lea.sflag [#allocation6], %s388
        %s390 = sand.u32 %s240, 1
        %s391 = scalar_lea.vmem [#allocation5], %s390
        %p392 = pneg %p279
        %p393 = pneg %p276
        %s394 = sand.u32 %s266, 1
        %s395 = scalar_lea.sflag [#allocation8], %s394
        %s396 = sand.u32 %s266, 1
        %s397 = scalar_lea.vmem [#allocation7], %s396
        %p398 = pneg %p305
        %p399 = pneg %p302
        %p400 = scmp.lt.s32.totalorder %s38, 1
        %s401 = scalar_select %p400, %s38, 1
        %s402 = smul.addr %s401, 3
        %s403 = smul.addr %s402, 8
        %s404 = scalar_lea.vmem %s12, %s403
        %p405 = scmp.lt.s32.totalorder %s38, 1
        %s406 = scalar_select %p405, %s38, 1
        %s407 = smul.addr %s406, 3
        %s408 = smul.addr %s407, 8
        %s409 = scalar_lea.vmem %s1, %s408
        %p410 = scmp.lt.s32.totalorder %s38, 1
        %s411 = scalar_select %p410, %s38, 1
        %s412 = smul.addr %s411, 3
        %s413 = smul.addr %s412, 8
        %s414 = scalar_lea.vmem %s12, %s413
        %s416 = sld [smem:[#allocation4 + %s38]]
        %v417 = vlaneseq
        %v418 = vand.u32 %v417, 127
        %v419 = vstv %s416
        %vm420 = vcmp.ge.s32.totalorder %v418, %v419
        %vm421 = vcmask 253952
        %422 = vst.msk [vmem:[#allocation2] sm:$0x1] %vm421, 0.0
        %423 = vst.msk [vmem:[#allocation2 + $0x11] sm:$0x1] %vm421, 0.0
        %v424 = vld [vmem:[%s409] sm:$0xff]
        %v425 = vld [vmem:[%s409 + $0x8] sm:$0xff]
        %v426 = vld [vmem:[%s409 + $0x10] sm:$0x3]
        %vm430 = vcmask 1046528
        %v431 = vrot.slane %v424, 1
        %v432 = vrot.slane %v425, 1
        %v433 = vsel %vm430, %v431, %v432
        %v434 = vrot.slane %v426, 1
        %v435 = vsel %vm430, %v432, %v434
        %436 = vrot.lane.b32.xlu0 %v433, 32
        %v437 = vpop.permute.xlu0 %436
        %438 = vrot.lane.b32.xlu0 %v435, 32
        %v439 = vpop.permute.xlu0 %438
        %vm442 = vcmask 1045504
        %v443 = vrot.slane %v424, 2
        %v444 = vrot.slane %v425, 2
        %v445 = vsel %vm442, %v443, %v444
        %v446 = vrot.slane %v426, 2
        %v447 = vsel %vm442, %v444, %v446
        %448 = vrot.lane.b32.xlu0 %v445, 64
        %v449 = vpop.permute.xlu0 %448
        %450 = vrot.lane.b32.xlu0 %v447, 64
        %v451 = vpop.permute.xlu0 %450
        %vm454 = vcmask 261120
        %v455 = vsel %vm454, %v424, %v437
        %v456 = vsel %vm454, %v425, %v439
        %vm457 = vcmask 523264
        %v458 = vsel %vm457, %v455, %v449
        %v459 = vsel %vm457, %v456, %v451
        %v460 = vpack.c.bf16 %v459, %v458
        %v461 = vld [vmem:[%s2] sm:$0xf]
        %v462 = vld [vmem:[%s2 + $0x4] sm:$0xf]
        %v463 = vld [vmem:[%s2 + $0x8] sm:$0xf]
        %v464 = vld [vmem:[%s2 + $0xc] sm:$0xf]
        %v465 = vld [vmem:[%s2 + $0x10] sm:$0xf]
        %v466 = vld [vmem:[%s2 + $0x14] sm:$0xf]
        %v467 = vld [vmem:[%s2 + $0x18] sm:$0xf]
        %v468 = vld [vmem:[%s2 + $0x1c] sm:$0xf]
        %v469 = vld [vmem:[%s2 + $0x20] sm:$0xf]
        %v470 = vld [vmem:[%s2 + $0x24] sm:$0xf]
        %v471 = vld [vmem:[%s2 + $0x28] sm:$0xf]
        %v472 = vld [vmem:[%s2 + $0x2c] sm:$0xf]
        %v473 = vld [vmem:[%s4] sm:$0x1]
        %v474 = vperm.slane %v473, 0
        %v487 = vunpack.c.l.b16 %v461
        %v488 = vunpack.c.l.b16 %v462
        %v489 = vunpack.c.l.b16 %v463
        %v490 = vunpack.c.l.b16 %v464
        %v491 = vunpack.c.l.b16 %v465
        %v492 = vunpack.c.l.b16 %v466
        %v493 = vunpack.c.l.b16 %v467
        %v494 = vunpack.c.l.b16 %v468
        %v495 = vunpack.c.l.b16 %v469
        %v496 = vunpack.c.l.b16 %v470
        %v497 = vunpack.c.l.b16 %v471
        %v498 = vunpack.c.l.b16 %v472
        %v499 = vpack.c.b16 %v488, %v487
        %v500 = vpack.c.b16 %v490, %v489
        %v501 = vpack.c.b16 %v492, %v491
        %v502 = vpack.c.b16 %v494, %v493
        %v503 = vpack.c.b16 %v496, %v495
        %v504 = vpack.c.b16 %v498, %v497
        %vm511 = vcmask 785408
        %v513 = vsel %vm511, %v460, 0
        %515 = vmatpush.bf16.msra.mxu0 0
        %516 = vmatpush.bf16.msra.mxu0 0
        %517 = vmatpush.bf16.msra.mxu0 %v504
        %518 = vmatpush.bf16.msra.mxu0 %v503
        %519 = vmatpush.bf16.msra.mxu0 %v502
        %520 = vmatpush.bf16.msra.mxu0 %v501
        %521 = vmatpush.bf16.msra.mxu0 %v500
        %522 = vmatpush.bf16.msra.mxu0 %v499
        %523 = vmatmul.bf16.gmra.mxu0 %v513
        %v524 = vpop.f32.mrf.mxu0
        %v525 = vadd.f32 %v474, %v524
        %v526 = vpop.f32.mrf.mxu0
        %v527 = vadd.f32 %v474, %v526
        %528 = vdwg.mxu0
        %v529 = vmax.f32 %v525, 0.0
        %v530 = vmax.f32 %v527, 0.0
        %v531 = vld [vmem:[%s4 + $0x1] sm:$0x1]
        %v532 = vld [vmem:[%s4 + $0x2] sm:$0x1]
        %v533 = vsel %vm454, %v529, 0.0
        %534 = vadd.xlane.f32.xlu0 %v533
        %v535 = vpop.xlane.xlu0 %534
        %v536 = vsel %vm454, %v530, 0.0
        %537 = vadd.xlane.f32.xlu0 %v536
        %v538 = vpop.xlane.xlu0 %537
        %v539 = vrcp.pop 32.0
        %v540 = vmul.f32 32.0, %v539
        %v541 = vsub.f32 1.0, %v540
        %v542 = vmul.f32 %v539, %v541
        %v543 = vadd.f32 %v539, %v542
        %vm544 = vweird.f32 %v539
        %v545 = vsel %vm544, %v539, %v543
        %v546 = vmul.f32 %v535, %v545
        %v547 = vmul.f32 %v538, %v545
        %v548 = vsub.f32 %v529, %v546
        %v549 = vsub.f32 %v530, %v547
        %v550 = vmul.f32 %v548, %v548
        %v551 = vmul.f32 %v549, %v549
        %v552 = vsel %vm454, %v550, 0.0
        %553 = vadd.xlane.f32.xlu0 %v552
        %v554 = vpop.xlane.xlu0 %553
        %v555 = vsel %vm454, %v551, 0.0
        %556 = vadd.xlane.f32.xlu0 %v555
        %v557 = vpop.xlane.xlu0 %556
        %v558 = vmul.f32 %v554, %v545
        %v559 = vmul.f32 %v557, %v545
        %v560 = vadd.f32 %v558, 1e-05
        %v561 = vadd.f32 %v559, 1e-05
        %v562 = vrsqrt.pop %v560
        %v563 = vmul.f32 %v562, %v560
        %v564 = vmul.f32 %v563, %v562
        %v565 = vmul.f32 0.5, %v564
        %v566 = vsub.f32 1.5, %v565
        %v567 = vmul.f32 %v562, %v566
        %vm568 = vweird.f32 %v560
        %vm569 = vweird.f32 %v562
        %vm570 = vmor %vm568, %vm569
        %v571 = vsel %vm570, %v562, %v567
        %v572 = vrsqrt.pop %v561
        %v573 = vmul.f32 %v572, %v561
        %v574 = vmul.f32 %v573, %v572
        %v575 = vmul.f32 0.5, %v574
        %v576 = vsub.f32 1.5, %v575
        %v577 = vmul.f32 %v572, %v576
        %vm578 = vweird.f32 %v561
        %vm579 = vweird.f32 %v572
        %vm580 = vmor %vm578, %vm579
        %v581 = vsel %vm580, %v572, %v577
        %v582 = vmul.f32 %v548, %v571
        %v583 = vmul.f32 %v549, %v581
        %v584 = vperm.slane %v531, 0
        %v585 = vmul.f32 %v582, %v584
        %v586 = vmul.f32 %v583, %v584
        %v587 = vperm.slane %v532, 0
        %v588 = vadd.f32 %v585, %v587
        %v589 = vadd.f32 %v586, %v587
        %590 = vst.msk [vmem:[#allocation2 + $0x1] sm:$0xff] %vm454, %v588
        %591 = vst.msk [vmem:[#allocation2 + $0x9] sm:$0xff] %vm454, %v589
        %v592 = vld [vmem:[#allocation2] sm:$0xff]
        %v593 = vld [vmem:[#allocation2 + $0x8] sm:$0xff]
        %v594 = vld [vmem:[#allocation2 + $0x1] sm:$0xff]
        %v595 = vld [vmem:[#allocation2 + $0x9] sm:$0xff]
        %v596 = vld [vmem:[#allocation2 + $0x2] sm:$0xff]
        %v597 = vld [vmem:[#allocation2 + $0xa] sm:$0xff]
        %600 = vrot.lane.b32.xlu0 %v594, 32
        %v601 = vpop.permute.xlu0 %600
        %602 = vrot.lane.b32.xlu0 %v595, 32
        %v603 = vpop.permute.xlu0 %602
        %608 = vrot.lane.b32.xlu0 %v596, 64
        %v609 = vpop.permute.xlu0 %608
        %610 = vrot.lane.b32.xlu0 %v597, 64
        %v611 = vpop.permute.xlu0 %610
        %v614 = vsel %vm454, %v592, %v601
        %v615 = vsel %vm454, %v593, %v603
        %v616 = vsel %vm457, %v614, %v609
        %v617 = vsel %vm457, %v615, %v611
        %v618 = vpack.c.bf16 %v617, %v616
        %v619 = vld [vmem:[%s3] sm:$0xf]
        %v620 = vld [vmem:[%s3 + $0x4] sm:$0xf]
        %v621 = vld [vmem:[%s3 + $0x8] sm:$0xf]
        %v622 = vld [vmem:[%s3 + $0xc] sm:$0xf]
        %v623 = vld [vmem:[%s3 + $0x10] sm:$0xf]
        %v624 = vld [vmem:[%s3 + $0x14] sm:$0xf]
        %v625 = vld [vmem:[%s3 + $0x18] sm:$0xf]
        %v626 = vld [vmem:[%s3 + $0x1c] sm:$0xf]
        %v627 = vld [vmem:[%s3 + $0x20] sm:$0xf]
        %v628 = vld [vmem:[%s3 + $0x24] sm:$0xf]
        %v629 = vld [vmem:[%s3 + $0x28] sm:$0xf]
        %v630 = vld [vmem:[%s3 + $0x2c] sm:$0xf]
        %v631 = vld [vmem:[%s4 + $0x3] sm:$0x1]
        %v632 = vperm.slane %v631, 0
        %v645 = vunpack.c.l.b16 %v619
        %v646 = vunpack.c.l.b16 %v620
        %v647 = vunpack.c.l.b16 %v621
        %v648 = vunpack.c.l.b16 %v622
        %v649 = vunpack.c.l.b16 %v623
        %v650 = vunpack.c.l.b16 %v624
        %v651 = vunpack.c.l.b16 %v625
        %v652 = vunpack.c.l.b16 %v626
        %v653 = vunpack.c.l.b16 %v627
        %v654 = vunpack.c.l.b16 %v628
        %v655 = vunpack.c.l.b16 %v629
        %v656 = vunpack.c.l.b16 %v630
        %v657 = vpack.c.b16 %v646, %v645
        %v658 = vpack.c.b16 %v648, %v647
        %v659 = vpack.c.b16 %v650, %v649
        %v660 = vpack.c.b16 %v652, %v651
        %v661 = vpack.c.b16 %v654, %v653
        %v662 = vpack.c.b16 %v656, %v655
        %v670 = vsel %vm511, %v618, 0
        %672 = vmatpush.bf16.msra.mxu0 0
        %673 = vmatpush.bf16.msra.mxu0 0
        %674 = vmatpush.bf16.msra.mxu0 %v662
        %675 = vmatpush.bf16.msra.mxu0 %v661
        %676 = vmatpush.bf16.msra.mxu0 %v660
        %677 = vmatpush.bf16.msra.mxu0 %v659
        %678 = vmatpush.bf16.msra.mxu0 %v658
        %679 = vmatpush.bf16.msra.mxu0 %v657
        %680 = vmatmul.bf16.gmra.mxu0 %v670
        %v681 = vpop.f32.mrf.mxu0
        %v682 = vadd.f32 %v632, %v681
        %v683 = vpop.f32.mrf.mxu0
        %v684 = vadd.f32 %v632, %v683
        %685 = vdwg.mxu0
        %v686 = vmax.f32 %v682, 0.0
        %v687 = vmax.f32 %v684, 0.0
        %v688 = vld [vmem:[%s4 + $0x4] sm:$0x1]
        %v689 = vld [vmem:[%s4 + $0x5] sm:$0x1]
        %v690 = vsel %vm454, %v686, 0.0
        %691 = vadd.xlane.f32.xlu0 %v690
        %v692 = vpop.xlane.xlu0 %691
        %v693 = vsel %vm454, %v687, 0.0
        %694 = vadd.xlane.f32.xlu0 %v693
        %v695 = vpop.xlane.xlu0 %694
        %v696 = vmul.f32 %v692, %v545
        %v697 = vmul.f32 %v695, %v545
        %v698 = vsub.f32 %v686, %v696
        %v699 = vsub.f32 %v687, %v697
        %v700 = vmul.f32 %v698, %v698
        %v701 = vmul.f32 %v699, %v699
        %v702 = vsel %vm454, %v700, 0.0
        %703 = vadd.xlane.f32.xlu0 %v702
        %v704 = vpop.xlane.xlu0 %703
        %v705 = vsel %vm454, %v701, 0.0
        %706 = vadd.xlane.f32.xlu0 %v705
        %v707 = vpop.xlane.xlu0 %706
        %v708 = vmul.f32 %v704, %v545
        %v709 = vmul.f32 %v707, %v545
        %v710 = vadd.f32 %v708, 1e-05
        %v711 = vadd.f32 %v709, 1e-05
        %v712 = vrsqrt.pop %v710
        %v713 = vmul.f32 %v712, %v710
        %v714 = vmul.f32 %v713, %v712
        %v715 = vmul.f32 0.5, %v714
        %v716 = vsub.f32 1.5, %v715
        %v717 = vmul.f32 %v712, %v716
        %vm718 = vweird.f32 %v710
        %vm719 = vweird.f32 %v712
        %vm720 = vmor %vm718, %vm719
        %v721 = vsel %vm720, %v712, %v717
        %v722 = vrsqrt.pop %v711
        %v723 = vmul.f32 %v722, %v711
        %v724 = vmul.f32 %v723, %v722
        %v725 = vmul.f32 0.5, %v724
        %v726 = vsub.f32 1.5, %v725
        %v727 = vmul.f32 %v722, %v726
        %vm728 = vweird.f32 %v711
        %vm729 = vweird.f32 %v722
        %vm730 = vmor %vm728, %vm729
        %v731 = vsel %vm730, %v722, %v727
        %v732 = vmul.f32 %v698, %v721
        %v733 = vmul.f32 %v699, %v731
        %v734 = vperm.slane %v688, 0
        %v735 = vmul.f32 %v732, %v734
        %v736 = vmul.f32 %v733, %v734
        %v737 = vperm.slane %v689, 0
        %v738 = vadd.f32 %v735, %v737
        %v739 = vadd.f32 %v736, %v737
        %v740 = vld [vmem:[%s4 + $0x6] sm:$0x1]
        %v741 = vld [vmem:[%s4 + $0x7] sm:$0x1]
        %743 = vset.pattern.permute.xlu0 0
        %744 = vperm.xlu0 %743, %v741
        %v745 = vpop.permute.xlu0 %744
        %v748 = vsel %vm454, %v740, 0
        %v751 = vsel %vm454, %v738, 0
        %v754 = vsel %vm454, %v739, 0
        %756 = vmatpush.xpose.msra.mxu0 0.0
        %757 = vmatpush.xpose.msra.mxu0 0.0
        %758 = vmatpush.xpose.msra.mxu0 0.0
        %759 = vmatpush.xpose.msra.mxu0 0.0
        %760 = vmatpush.xpose.msra.mxu0 0.0
        %761 = vmatpush.xpose.msra.mxu0 0.0
        %762 = vmatpush.xpose.msra.mxu0 0.0
        %763 = vmatpush.xpose.msra.mxu0 0.0
        %764 = vmatpush.xpose.msra.mxu0 0.0
        %765 = vmatpush.xpose.msra.mxu0 0.0
        %766 = vmatpush.xpose.msra.mxu0 0.0
        %767 = vmatpush.xpose.msra.mxu0 0.0
        %768 = vmatpush.xpose.msra.mxu0 0.0
        %769 = vmatpush.xpose.msra.mxu0 0.0
        %770 = vmatpush.xpose.msra.mxu0 %v754
        %771 = vmatpush.xpose.msra.mxu0 %v751
        %772 = vmatmul.f32.gmra.mxu0 %v748
        %v773 = vpop.f32.mrf.mxu0
        %v774 = vadd.f32 %v745, %v773
        %775 = vdwg.mxu0
        %v776 = vsel %vm420, 0.0, %v774
        %vm777 = vcmask 122880
        %778 = vst.msk [vmem:[%s391] sm:$0x1] %vm777, %v776
        %v779 = vld [vmem:[%s5] sm:$0xf]
        %v780 = vld [vmem:[%s5 + $0x4] sm:$0xf]
        %v781 = vld [vmem:[%s5 + $0x8] sm:$0xf]
        %v782 = vld [vmem:[%s5 + $0xc] sm:$0xf]
        %v783 = vld [vmem:[%s5 + $0x10] sm:$0xf]
        %v784 = vld [vmem:[%s5 + $0x14] sm:$0xf]
        %v785 = vld [vmem:[%s5 + $0x18] sm:$0xf]
        %v786 = vld [vmem:[%s5 + $0x1c] sm:$0xf]
        %v787 = vld [vmem:[%s5 + $0x20] sm:$0xf]
        %v788 = vld [vmem:[%s5 + $0x24] sm:$0xf]
        %v789 = vld [vmem:[%s5 + $0x28] sm:$0xf]
        %v790 = vld [vmem:[%s5 + $0x2c] sm:$0xf]
        %v791 = vld [vmem:[%s7] sm:$0x1]
        %v792 = vperm.slane %v791, 0
        %v805 = vunpack.c.l.b16 %v779
        %v806 = vunpack.c.l.b16 %v780
        %v807 = vunpack.c.l.b16 %v781
        %v808 = vunpack.c.l.b16 %v782
        %v809 = vunpack.c.l.b16 %v783
        %v810 = vunpack.c.l.b16 %v784
        %v811 = vunpack.c.l.b16 %v785
        %v812 = vunpack.c.l.b16 %v786
        %v813 = vunpack.c.l.b16 %v787
        %v814 = vunpack.c.l.b16 %v788
        %v815 = vunpack.c.l.b16 %v789
        %v816 = vunpack.c.l.b16 %v790
        %v817 = vpack.c.b16 %v806, %v805
        %v818 = vpack.c.b16 %v808, %v807
        %v819 = vpack.c.b16 %v810, %v809
        %v820 = vpack.c.b16 %v812, %v811
        %v821 = vpack.c.b16 %v814, %v813
        %v822 = vpack.c.b16 %v816, %v815
        %829 = vmatpush.bf16.msra.mxu0 0
        %830 = vmatpush.bf16.msra.mxu0 0
        %831 = vmatpush.bf16.msra.mxu0 %v822
        %832 = vmatpush.bf16.msra.mxu0 %v821
        %833 = vmatpush.bf16.msra.mxu0 %v820
        %834 = vmatpush.bf16.msra.mxu0 %v819
        %835 = vmatpush.bf16.msra.mxu0 %v818
        %836 = vmatpush.bf16.msra.mxu0 %v817
        %837 = vmatmul.bf16.gmra.mxu0 %v513
        %v838 = vpop.f32.mrf.mxu0
        %v839 = vadd.f32 %v792, %v838
        %v840 = vpop.f32.mrf.mxu0
        %v841 = vadd.f32 %v792, %v840
        %842 = vdwg.mxu0
        %v843 = vmax.f32 %v839, 0.0
        %v844 = vmax.f32 %v841, 0.0
        %v845 = vld [vmem:[%s7 + $0x1] sm:$0x1]
        %v846 = vld [vmem:[%s7 + $0x2] sm:$0x1]
        %v847 = vsel %vm454, %v843, 0.0
        %848 = vadd.xlane.f32.xlu0 %v847
        %v849 = vpop.xlane.xlu0 %848
        %v850 = vsel %vm454, %v844, 0.0
        %851 = vadd.xlane.f32.xlu0 %v850
        %v852 = vpop.xlane.xlu0 %851
        %v853 = vmul.f32 %v849, %v545
        %v854 = vmul.f32 %v852, %v545
        %v855 = vsub.f32 %v843, %v853
        %v856 = vsub.f32 %v844, %v854
        %v857 = vmul.f32 %v855, %v855
        %v858 = vmul.f32 %v856, %v856
        %v859 = vsel %vm454, %v857, 0.0
        %860 = vadd.xlane.f32.xlu0 %v859
        %v861 = vpop.xlane.xlu0 %860
        %v862 = vsel %vm454, %v858, 0.0
        %863 = vadd.xlane.f32.xlu0 %v862
        %v864 = vpop.xlane.xlu0 %863
        %v865 = vmul.f32 %v861, %v545
        %v866 = vmul.f32 %v864, %v545
        %v867 = vadd.f32 %v865, 1e-05
        %v868 = vadd.f32 %v866, 1e-05
        %v869 = vrsqrt.pop %v867
        %v870 = vmul.f32 %v869, %v867
        %v871 = vmul.f32 %v870, %v869
        %v872 = vmul.f32 0.5, %v871
        %v873 = vsub.f32 1.5, %v872
        %v874 = vmul.f32 %v869, %v873
        %vm875 = vweird.f32 %v867
        %vm876 = vweird.f32 %v869
        %vm877 = vmor %vm875, %vm876
        %v878 = vsel %vm877, %v869, %v874
        %v879 = vrsqrt.pop %v868
        %v880 = vmul.f32 %v879, %v868
        %v881 = vmul.f32 %v880, %v879
        %v882 = vmul.f32 0.5, %v881
        %v883 = vsub.f32 1.5, %v882
        %v884 = vmul.f32 %v879, %v883
        %vm885 = vweird.f32 %v868
        %vm886 = vweird.f32 %v879
        %vm887 = vmor %vm885, %vm886
        %v888 = vsel %vm887, %v879, %v884
        %v889 = vmul.f32 %v855, %v878
        %v890 = vmul.f32 %v856, %v888
        %v891 = vperm.slane %v845, 0
        %v892 = vmul.f32 %v889, %v891
        %v893 = vmul.f32 %v890, %v891
        %v894 = vperm.slane %v846, 0
        %v895 = vadd.f32 %v892, %v894
        %v896 = vadd.f32 %v893, %v894
        %897 = vst.msk [vmem:[#allocation2 + $0x1] sm:$0xff] %vm454, %v895
        %898 = vst.msk [vmem:[#allocation2 + $0x9] sm:$0xff] %vm454, %v896
        %v899 = vld [vmem:[#allocation2] sm:$0xff]
        %v900 = vld [vmem:[#allocation2 + $0x8] sm:$0xff]
        %v901 = vld [vmem:[#allocation2 + $0x1] sm:$0xff]
        %v902 = vld [vmem:[#allocation2 + $0x9] sm:$0xff]
        %v903 = vld [vmem:[#allocation2 + $0x2] sm:$0xff]
        %v904 = vld [vmem:[#allocation2 + $0xa] sm:$0xff]
        %907 = vrot.lane.b32.xlu0 %v901, 32
        %v908 = vpop.permute.xlu0 %907
        %909 = vrot.lane.b32.xlu0 %v902, 32
        %v910 = vpop.permute.xlu0 %909
        %915 = vrot.lane.b32.xlu0 %v903, 64
        %v916 = vpop.permute.xlu0 %915
        %917 = vrot.lane.b32.xlu0 %v904, 64
        %v918 = vpop.permute.xlu0 %917
        %v921 = vsel %vm454, %v899, %v908
        %v922 = vsel %vm454, %v900, %v910
        %v923 = vsel %vm457, %v921, %v916
        %v924 = vsel %vm457, %v922, %v918
        %v925 = vpack.c.bf16 %v924, %v923
        %v926 = vld [vmem:[%s6] sm:$0xf]
        %v927 = vld [vmem:[%s6 + $0x4] sm:$0xf]
        %v928 = vld [vmem:[%s6 + $0x8] sm:$0xf]
        %v929 = vld [vmem:[%s6 + $0xc] sm:$0xf]
        %v930 = vld [vmem:[%s6 + $0x10] sm:$0xf]
        %v931 = vld [vmem:[%s6 + $0x14] sm:$0xf]
        %v932 = vld [vmem:[%s6 + $0x18] sm:$0xf]
        %v933 = vld [vmem:[%s6 + $0x1c] sm:$0xf]
        %v934 = vld [vmem:[%s6 + $0x20] sm:$0xf]
        %v935 = vld [vmem:[%s6 + $0x24] sm:$0xf]
        %v936 = vld [vmem:[%s6 + $0x28] sm:$0xf]
        %v937 = vld [vmem:[%s6 + $0x2c] sm:$0xf]
        %v938 = vld [vmem:[%s7 + $0x3] sm:$0x1]
        %v939 = vperm.slane %v938, 0
        %v952 = vunpack.c.l.b16 %v926
        %v953 = vunpack.c.l.b16 %v927
        %v954 = vunpack.c.l.b16 %v928
        %v955 = vunpack.c.l.b16 %v929
        %v956 = vunpack.c.l.b16 %v930
        %v957 = vunpack.c.l.b16 %v931
        %v958 = vunpack.c.l.b16 %v932
        %v959 = vunpack.c.l.b16 %v933
        %v960 = vunpack.c.l.b16 %v934
        %v961 = vunpack.c.l.b16 %v935
        %v962 = vunpack.c.l.b16 %v936
        %v963 = vunpack.c.l.b16 %v937
        %v964 = vpack.c.b16 %v953, %v952
        %v965 = vpack.c.b16 %v955, %v954
        %v966 = vpack.c.b16 %v957, %v956
        %v967 = vpack.c.b16 %v959, %v958
        %v968 = vpack.c.b16 %v961, %v960
        %v969 = vpack.c.b16 %v963, %v962
        %v977 = vsel %vm511, %v925, 0
        %979 = vmatpush.bf16.msra.mxu0 0
        %980 = vmatpush.bf16.msra.mxu0 0
        %981 = vmatpush.bf16.msra.mxu0 %v969
        %982 = vmatpush.bf16.msra.mxu0 %v968
        %983 = vmatpush.bf16.msra.mxu0 %v967
        %984 = vmatpush.bf16.msra.mxu0 %v966
        %985 = vmatpush.bf16.msra.mxu0 %v965
        %986 = vmatpush.bf16.msra.mxu0 %v964
        %987 = vmatmul.bf16.gmra.mxu0 %v977
        %v988 = vpop.f32.mrf.mxu0
        %v989 = vadd.f32 %v939, %v988
        %v990 = vpop.f32.mrf.mxu0
        %v991 = vadd.f32 %v939, %v990
        %992 = vdwg.mxu0
        %v993 = vmax.f32 %v989, 0.0
        %v994 = vmax.f32 %v991, 0.0
        %v995 = vld [vmem:[%s7 + $0x4] sm:$0x1]
        %v996 = vld [vmem:[%s7 + $0x5] sm:$0x1]
        %v997 = vsel %vm454, %v993, 0.0
        %998 = vadd.xlane.f32.xlu0 %v997
        %v999 = vpop.xlane.xlu0 %998
        %v1000 = vsel %vm454, %v994, 0.0
        %1001 = vadd.xlane.f32.xlu0 %v1000
        %v1002 = vpop.xlane.xlu0 %1001
        %v1003 = vmul.f32 %v999, %v545
        %v1004 = vmul.f32 %v1002, %v545
        %v1005 = vsub.f32 %v993, %v1003
        %v1006 = vsub.f32 %v994, %v1004
        %v1007 = vmul.f32 %v1005, %v1005
        %v1008 = vmul.f32 %v1006, %v1006
        %v1009 = vsel %vm454, %v1007, 0.0
        %1010 = vadd.xlane.f32.xlu0 %v1009
        %v1011 = vpop.xlane.xlu0 %1010
        %v1012 = vsel %vm454, %v1008, 0.0
        %1013 = vadd.xlane.f32.xlu0 %v1012
        %v1014 = vpop.xlane.xlu0 %1013
        %v1015 = vmul.f32 %v1011, %v545
        %v1016 = vmul.f32 %v1014, %v545
        %v1017 = vadd.f32 %v1015, 1e-05
        %v1018 = vadd.f32 %v1016, 1e-05
        %v1019 = vrsqrt.pop %v1017
        %v1020 = vmul.f32 %v1019, %v1017
        %v1021 = vmul.f32 %v1020, %v1019
        %v1022 = vmul.f32 0.5, %v1021
        %v1023 = vsub.f32 1.5, %v1022
        %v1024 = vmul.f32 %v1019, %v1023
        %vm1025 = vweird.f32 %v1017
        %vm1026 = vweird.f32 %v1019
        %vm1027 = vmor %vm1025, %vm1026
        %v1028 = vsel %vm1027, %v1019, %v1024
        %v1029 = vrsqrt.pop %v1018
        %v1030 = vmul.f32 %v1029, %v1018
        %v1031 = vmul.f32 %v1030, %v1029
        %v1032 = vmul.f32 0.5, %v1031
        %v1033 = vsub.f32 1.5, %v1032
        %v1034 = vmul.f32 %v1029, %v1033
        %vm1035 = vweird.f32 %v1018
        %vm1036 = vweird.f32 %v1029
        %vm1037 = vmor %vm1035, %vm1036
        %v1038 = vsel %vm1037, %v1029, %v1034
        %v1039 = vmul.f32 %v1005, %v1028
        %v1040 = vmul.f32 %v1006, %v1038
        %v1041 = vperm.slane %v995, 0
        %v1042 = vmul.f32 %v1039, %v1041
        %v1043 = vmul.f32 %v1040, %v1041
        %v1044 = vperm.slane %v996, 0
        %v1045 = vadd.f32 %v1042, %v1044
        %v1046 = vadd.f32 %v1043, %v1044
        %v1047 = vld [vmem:[%s7 + $0x6] sm:$0x1]
        %v1048 = vld [vmem:[%s7 + $0x7] sm:$0x1]
        %1050 = vset.pattern.permute.xlu0 0
        %1051 = vperm.xlu0 %1050, %v1048
        %v1052 = vpop.permute.xlu0 %1051
        %v1055 = vsel %vm454, %v1047, 0
        %v1058 = vsel %vm454, %v1045, 0
        %v1061 = vsel %vm454, %v1046, 0
        %1063 = vmatpush.xpose.msra.mxu0 0.0
        %1064 = vmatpush.xpose.msra.mxu0 0.0
        %1065 = vmatpush.xpose.msra.mxu0 0.0
        %1066 = vmatpush.xpose.msra.mxu0 0.0
        %1067 = vmatpush.xpose.msra.mxu0 0.0
        %1068 = vmatpush.xpose.msra.mxu0 0.0
        %1069 = vmatpush.xpose.msra.mxu0 0.0
        %1070 = vmatpush.xpose.msra.mxu0 0.0
        %1071 = vmatpush.xpose.msra.mxu0 0.0
        %1072 = vmatpush.xpose.msra.mxu0 0.0
        %1073 = vmatpush.xpose.msra.mxu0 0.0
        %1074 = vmatpush.xpose.msra.mxu0 0.0
        %1075 = vmatpush.xpose.msra.mxu0 0.0
        %1076 = vmatpush.xpose.msra.mxu0 0.0
        %1077 = vmatpush.xpose.msra.mxu0 %v1061
        %1078 = vmatpush.xpose.msra.mxu0 %v1058
        %1079 = vmatmul.f32.gmra.mxu0 %v1055
        %v1080 = vpop.f32.mrf.mxu0
        %v1081 = vadd.f32 %v1052, %v1080
        %1082 = vdwg.mxu0
        %v1083 = vsel %vm420, 0.0, %v1081
        %1084 = vst.msk [vmem:[%s397] sm:$0x1] %vm777, %v1083
        %v1085 = vld [vmem:[%s8] sm:$0xff]
        %v1086 = vld [vmem:[%s8 + $0x8] sm:$0x7f]
        %1088 = vset.pattern.permute.xlu0 0
        %1089 = vperm.xlu0 %1088, %v1085
        %v1090 = vpop.permute.xlu0 %1089
        %1093 = vset.pattern.permute.xlu0 0
        %1094 = vperm.xlu0 %1093, %v1086
        %v1095 = vpop.permute.xlu0 %1094
        %v1097 = vperm.slane %v1083, 0
        %vm1098 = vcmp.lt.f32.partialorder %v1090, %v1097
        %vm1099 = vcmp.lt.f32.partialorder %v1095, %v1097
        %v1100 = vsel %vm1098, 1, 0
        %v1101 = vsel %vm1099, 1, 0
        %v1102 = vcvt.s32.f32 %v1100
        %v1103 = vcvt.s32.f32 %v1101
        %vm1104 = vcmask 130048
        %v1105 = vsel %vm1104, %v1102, 0.0
        %vm1106 = vcmask 129024
        %v1107 = vsel %vm1106, %v1103, 0.0
        %v1108 = vadd.f32 %v1105, %v1107
        %v1109 = vrot.slane %v1108, 4
        %v1110 = vadd.f32 %v1108, %v1109
        %v1111 = vrot.slane %v1110, 2
        %v1112 = vadd.f32 %v1110, %v1111
        %v1113 = vrot.slane %v1112, 1
        %v1114 = vadd.f32 %v1112, %v1113
        %v1115 = vcvt.f32.s32.to.zero.pseudo %v1114
        %v1116 = vlaneseq
        %v1117 = vshrl.u32 %v1116, 7
        %v1118 = vadd.s32 %v1117, 8
        %vm1119 = vcmp.eq.s32.totalorder %v1117, %v1115
        %vm1120 = vcmp.eq.s32.totalorder %v1118, %v1115
        %v1121 = vsel %vm1119, 1, 0
        %v1122 = vsel %vm1120, 1, 0
        %v1123 = vcvt.s32.f32 %v1121
        %v1124 = vcvt.s32.f32 %v1122
        %v1125 = vpack.c.bf16 %v1124, %v1123
        %v1126 = vld [vmem:[%s9] sm:$0xff]
        %v1127 = vld [vmem:[%s9 + $0x8] sm:$0xff]
        %v1128 = vpack.c.bf16 %v1127, %v1126
        %1129 = vxpose.xlu0.c.b16.start [1/8] %v1125, 128
        %1130 = vxpose.xlu0.c.b16.cont [2/8] 0, 128
        %1131 = vxpose.xlu0.c.b16.cont [3/8] 0, 128
        %1132 = vxpose.xlu0.c.b16.cont [4/8] 0, 128
        %1133 = vxpose.xlu0.c.b16.cont [5/8] 0, 128
        %1134 = vxpose.xlu0.c.b16.cont [6/8] 0, 128
        %1135 = vxpose.xlu0.c.b16.cont [7/8] 0, 128
        %1136 = vxpose.xlu0.c.b16.end [8/8] 0, 128
        %v1137 = vpop.trf.xlu0
        %v1138 = vpop.trf.xlu0
        %v1139 = vpop.trf.xlu0
        %v1140 = vpop.trf.xlu0
        %v1141 = vpop.trf.xlu0
        %v1142 = vpop.trf.xlu0
        %v1143 = vpop.trf.xlu0
        %v1144 = vpop.trf.xlu0
        %v1146 = vsel %vm1104, %v1137, 0
        %1148 = vmatpush.bf16.msra.mxu0 0
        %1149 = vmatpush.bf16.msra.mxu0 0
        %1150 = vmatpush.bf16.msra.mxu0 0
        %1151 = vmatpush.bf16.msra.mxu0 0
        %1152 = vmatpush.bf16.msra.mxu0 0
        %1153 = vmatpush.bf16.msra.mxu0 0
        %1154 = vmatpush.bf16.msra.mxu0 0
        %1155 = vmatpush.bf16.msra.mxu0 %v1128
        %1156 = vmatmul.bf16.gmra.mxu0 %v1146
        %v1157 = vpop.f32.mrf.mxu0
        %v1158 = vadd.f32 0.0, %v1157
        %v1159 = vpop.f32.mrf.mxu0
        %v1160 = vadd.f32 0.0, %v1159
        %1161 = vdwg.mxu0
        %vm1164 = vcmask 1040384
        %v1165 = vrot.slane %v1158, 7
        %v1166 = vrot.slane %v1160, 7
        %v1167 = vsel %vm1164, %v1165, %v1166
        %v1171 = vadd.f32 %v424, %v1165
        %v1172 = vadd.f32 %v425, %v1167
        %v1173 = vadd.f32 %v426, %v1166
        %1174 = vst.msk [vmem:[%s414] sm:$0x1] %vm421, 0.0
        %1175 = vst.msk [vmem:[%s414 + $0x11] sm:$0x1] %vm421, 0.0
        %vm1176 = vcmask 261121
        %1177 = vst.msk [vmem:[%s414] sm:$0xfe] %vm1176, %v1171
        %1178 = vst.msk [vmem:[%s414 + $0x8] sm:$0xff] %vm454, %v1172
        %1179 = vst.msk [vmem:[%s414 + $0x10] sm:$0x1] %vm421, %v1173
        %s1180 = sand.u32 %s240, 1
        %s1181 = scalar_lea.sflag [#allocation6], %s1180
        %s1182 = sand.u32 %s240, 1
        %s1183 = scalar_lea.vmem [#allocation5], %s1182
        %s1184 = sand.u32 %s266, 1
        %s1185 = scalar_lea.sflag [#allocation8], %s1184
        %s1186 = sand.u32 %s266, 1
        %s1187 = scalar_lea.vmem [#allocation7], %s1186
        %p1188 = scmp.lt.s32.totalorder %s38, 1
        %s1189 = scalar_select %p1188, %s38, 1
        %s1190 = smul.addr %s1189, 3
        %s1191 = smul.addr %s1190, 8
        %s1192 = scalar_lea.vmem %s12, %s1191
        // Predicated region
        $region57: #{tpu_custom_call.1} parent=55 // pred_check
          %p1193 = pneg %p250
        $region58: #{tpu_custom_call.1} parent=55 // pred_check_branch
          %1195 = sbr.rel (%p1193) target = $region60
        $region59: #{tpu_custom_call.1} parent=55 // pred_region
          %1197 = vsyncadd %s1181, 0
          %s1198 = scalar_lea.hbm %s10, %s38
          %s1200 = sshll.u32 %s1183, 4
          %s1201 = int_to_ptr.vmem [resolvable:$true] %s1200
          %s1202 = sshll.u32 %s1198, 4
          %s1203 = int_to_ptr.hbm [resolvable:$true] %s1202
          %1205 = dma.vmem_to_hbm [thread:$0]  %s1201, 16, %s1203, %s1181
        $region60: #{tpu_custom_call.1} parent=55 // pred_fallthru
          _
        // Predicated region
        $region61: #{tpu_custom_call.1} parent=55 // pred_check
          %p1206 = pneg %p276
        $region62: #{tpu_custom_call.1} parent=55 // pred_check_branch
          %1208 = sbr.rel (%p1206) target = $region64
        $region63: #{tpu_custom_call.1} parent=55 // pred_region
          %1210 = vsyncadd %s1185, 0
          %s1211 = scalar_lea.hbm %s11, %s38
          %s1213 = sshll.u32 %s1187, 4
          %s1214 = int_to_ptr.vmem [resolvable:$true] %s1213
          %s1215 = sshll.u32 %s1211, 4
          %s1216 = int_to_ptr.hbm [resolvable:$true] %s1215
          %1218 = dma.vmem_to_hbm [thread:$0]  %s1214, 16, %s1216, %s1185
        $region64: #{tpu_custom_call.1} parent=55 // pred_fallthru
          _
        // Predicated region
        $region65: #{tpu_custom_call.1} parent=55 // pred_check
          %p1219 = pneg %p302
        $region66: #{tpu_custom_call.1} parent=55 // pred_check_branch
          %1221 = sbr.rel (%p1219) target = $region68
        $region67: #{tpu_custom_call.1} parent=55 // pred_region
          _
        $region68: #{tpu_custom_call.1} parent=55 // pred_fallthru
          _
      $region56: #{tpu_custom_call.1} parent=5 // pred_fallthru
        _
      %p1222 = scmp.le.s32.totalorder 2, %s33
      // Predicated region
      $region69: #{tpu_custom_call.1} parent=5 // pred_check
        %p1223 = pneg %p1222
      $region70: #{tpu_custom_call.1} parent=5 // pred_check_branch
        %1225 = sbr.rel (%p1223) target = $region72
      $region71: #{tpu_custom_call.1} parent=5 // pred_region
        %s1226 = ssub.s32 %s33, 2
        // Predicated region
        $region73: #{tpu_custom_call.1} parent=71 // pred_check
          %p1227 = pneg %p256
        $region74: #{tpu_custom_call.1} parent=71 // pred_check_branch
          %1229 = sbr.rel (%p1227) target = $region76
        $region75: #{tpu_custom_call.1} parent=71 // pred_region
          %s1230 = sand.u32 %s241, 1
          %s1231 = scalar_lea.sflag [#allocation6], %s1230
          %s1232 = sand.u32 %s241, 1
          %s1233 = scalar_lea.vmem [#allocation5], %s1232
          %1235 = dma.done %s1231, 16
        $region76: #{tpu_custom_call.1} parent=71 // pred_fallthru
          _
        // Predicated region
        $region77: #{tpu_custom_call.1} parent=71 // pred_check
          %p1236 = pneg %p282
        $region78: #{tpu_custom_call.1} parent=71 // pred_check_branch
          %1238 = sbr.rel (%p1236) target = $region80
        $region79: #{tpu_custom_call.1} parent=71 // pred_region
          %s1239 = sand.u32 %s267, 1
          %s1240 = scalar_lea.sflag [#allocation8], %s1239
          %s1241 = sand.u32 %s267, 1
          %s1242 = scalar_lea.vmem [#allocation7], %s1241
          %1244 = dma.done %s1240, 16
        $region80: #{tpu_custom_call.1} parent=71 // pred_fallthru
          _
        // Predicated region
        $region81: #{tpu_custom_call.1} parent=71 // pred_check
          %p1245 = pneg %p308
        $region82: #{tpu_custom_call.1} parent=71 // pred_check_branch
          %1247 = sbr.rel (%p1245) target = $region84
        $region83: #{tpu_custom_call.1} parent=71 // pred_region
          %p1248 = scmp.lt.s32.totalorder %s39, 1
          %s1249 = scalar_select %p1248, %s39, 1
          %s1250 = smul.addr %s1249, 3
          %s1251 = smul.addr %s1250, 8
          %s1252 = scalar_lea.vmem %s12, %s1251
        $region84: #{tpu_custom_call.1} parent=71 // pred_fallthru
          _
      $region72: #{tpu_custom_call.1} parent=5 // pred_fallthru
        _
    $region6: #{tpu_custom_call.1} parent=1 // loop_footer
      %s37 = sadd.s32 1, %s33
    $region7: #{tpu_custom_call.1} parent=1 // loop_footer_branch
      %32 = sbr.rel target = $region3
    $region8: #{tpu_custom_call.1} parent=1 // loop_exit
      _
    %1253 = vsyncpa [#allocation6], 1
    %s1254 = scalar_lea.sflag [#allocation6], 1
    %1255 = vsyncpa %s1254, 1
    %1256 = vsyncpa [#allocation8], 1
    %s1257 = scalar_lea.sflag [#allocation8], 1
    %1258 = vsyncpa %s1257, 1

</llo_original>
